<compile_context>
chip_gen: v7x
topology: tpu7x:2x2x1
jax: 0.10.0
libtpu: 0.0.40
codegen_flags: <defaults>
</compile_context>

<pallas_src>
import functools

import jax
import jax.numpy as jnp
import numpy as np
from jax import lax
from jax.experimental import pallas as pl
from jax.experimental.pallas import tpu as pltpu


# ----------------------------- in-kernel helpers -----------------------------

def _layernorm(x, gamma, beta, eps=1e-5):
    # x: (N, D), gamma/beta: (1, D)
    mu = jnp.mean(x, axis=-1, keepdims=True)
    d = x - mu
    var = jnp.mean(d * d, axis=-1, keepdims=True)
    return d * lax.rsqrt(var + eps) * gamma + beta


# ------------------------------- fused kernel --------------------------------

def transformer_kernel(x_ref,
                       ga_ref, ba_ref, wqkv_ref, wout_ref, bout_ref,
                       gf_ref, bf_ref, w1_ref, b1_ref, w2_ref, b2_ref,
                       gn_ref, bn_ref,
                       o_ref,
                       x_vmem, attn_vmem,
                       *, heads, dim_head):
    """One transformer layer for one batch element.

    Grid = (batch, layer).  Per-layer weight refs are the streamed block for the
    current layer (layer axis squeezed by the BlockSpec).  The (N, D) activation
    persists in `x_vmem` across layer steps.  The attention scale is pre-folded
    into the q-columns of wqkv.
    """
    l = pl.program_id(1)
    depth = pl.num_programs(1)
    inner = heads * dim_head

    @pl.when(l == 0)
    def _():
        x_vmem[...] = x_ref[...]

    x = x_vmem[...]                                               # (N, D), f32

    # -------------------- residual attention block --------------------
    xn = _layernorm(x, ga_ref[...], ba_ref[...])                  # (N, D)
    qkv = jnp.dot(xn, wqkv_ref[...],
                  preferred_element_type=jnp.float32)             # (N, 3*inner), one MXU pass

    for h in range(heads):                                        # static unroll over heads
        qo = h * dim_head
        q_h = qkv[:, qo:qo + dim_head]                            # (N, dh) activation slices
        k_h = qkv[:, inner + qo:inner + qo + dim_head]
        v_h = qkv[:, 2 * inner + qo:2 * inner + qo + dim_head]

        # contract trailing dims directly (no explicit transpose of k_h)
        dots = lax.dot_general(q_h, k_h, (((1,), (1,)), ((), ())),
                               preferred_element_type=jnp.float32)  # (N, N), scale pre-folded
        dots = dots - jnp.max(dots, axis=-1, keepdims=True)
        p = jnp.exp(dots)
        p = p / jnp.sum(p, axis=-1, keepdims=True)                # exact softmax
        attn_vmem[:, qo:qo + dim_head] = jnp.dot(
            p, v_h, preferred_element_type=jnp.float32)           # (N, dh)

    # single full-width output projection
    x = jnp.dot(attn_vmem[...], wout_ref[...],
                preferred_element_type=jnp.float32) + bout_ref[...] + x

    # -------------------- residual feed-forward block ------------------
    xn = _layernorm(x, gf_ref[...], bf_ref[...])
    h1 = jnp.dot(xn, w1_ref[...],
                 preferred_element_type=jnp.float32) + b1_ref[...]   # (N, mlp)
    # exact (erf-based) GELU, matching torch.nn.GELU() default
    h1 = 0.5 * h1 * (1.0 + lax.erf(h1 * 0.7071067811865476))
    x = jnp.dot(h1, w2_ref[...],
                preferred_element_type=jnp.float32) + b2_ref[...] + x

    x_vmem[...] = x

    # ------------------------- final LayerNorm -----------------------------
    @pl.when(l == depth - 1)
    def _():
        o_ref[...] = _layernorm(x, gn_ref[...], bn_ref[...])


# ------------------------------ pallas_call glue ------------------------------

_PARAM_ORDER = ("ga", "ba", "wqkv", "wout", "bout",
                "gf", "bf", "w1", "b1", "w2", "b2", "gn", "bn")
_PER_LAYER_KEYS = frozenset(_PARAM_ORDER) - {"gn", "bn"}


def _stack_params(params, *, heads, dim_head):
    """Stack per-layer params along a leading layer axis and fold the attention
    scale into the q-columns of wqkv (one-time weight transform)."""
    inner = heads * dim_head
    scale = dim_head ** (-0.5)
    attn_ps = [a for a, _ in params["layers"]]
    ff_ps = [f for _, f in params["layers"]]
    return dict(
        ga=jnp.stack([a["gamma"] for a in attn_ps]),                     # (L,1,D)
        ba=jnp.stack([a["beta"] for a in attn_ps]),                      # (L,1,D)
        wqkv=jnp.stack([a["wqkv"].at[:, :inner].multiply(scale)
                        for a in attn_ps]),                              # (L,D,3*inner)
        wout=jnp.stack([a["wout"] for a in attn_ps]),                    # (L,inner,D)
        bout=jnp.stack([a["bout"] for a in attn_ps]),                    # (L,1,D)
        gf=jnp.stack([f["gamma"] for f in ff_ps]),                       # (L,1,D)
        bf=jnp.stack([f["beta"] for f in ff_ps]),                        # (L,1,D)
        w1=jnp.stack([f["w1"] for f in ff_ps]),                          # (L,D,mlp)
        b1=jnp.stack([f["b1"] for f in ff_ps]),                          # (L,1,mlp)
        w2=jnp.stack([f["w2"] for f in ff_ps]),                          # (L,mlp,D)
        b2=jnp.stack([f["b2"] for f in ff_ps]),                          # (L,1,D)
        gn=params["norm"]["gamma"],                                      # (1,D)
        bn=params["norm"]["beta"],                                       # (1,D)
    )


def _vmem_budget(stacked, N, D, inner):
    """Estimate resident VMEM: double-buffered per-layer weight blocks, constant
    norm params, in/out activation blocks, scratches, plus headroom."""
    total = 0
    for k in _PARAM_ORDER:
        a = stacked[k]
        blk = np.prod(a.shape[1:]) if k in _PER_LAYER_KEYS else np.prod(a.shape)
        total += 2 * int(blk) * a.dtype.itemsize         # pipeline double-buffering
    total += 2 * 2 * N * D * 4                           # x input + output blocks
    total += (N * D + N * inner) * 4                     # persistent scratches
    total += 8 << 20                                     # headroom
    return int(min(max(total, 32 << 20), 100 << 20))


def transformer_forward(x, params, *, heads, dim_head):
    """Single fused pallas_call: grid=(batch, layer); layers streamed, activation
    kept VMEM-resident across layers."""
    B, N, D = x.shape
    depth = len(params["layers"])
    inner = heads * dim_head
    stacked = _stack_params(params, heads=heads, dim_head=dim_head)
    mlp = stacked["w1"].shape[-1]
    ops = [stacked[k] for k in _PARAM_ORDER]

    kernel = functools.partial(transformer_kernel, heads=heads, dim_head=dim_head)

    def per_layer(shape_tail):
        # streamed per-layer block: layer axis squeezed, full trailing dims
        return pl.BlockSpec((None,) + shape_tail,
                            lambda b, l, _n=len(shape_tail): (l,) + (0,) * _n)

    in_specs = [
        pl.BlockSpec((None, N, D), lambda b, l: (b, 0, 0)),   # x (constant over l)
        per_layer((1, D)),            # ga
        per_layer((1, D)),            # ba
        per_layer((D, 3 * inner)),    # wqkv
        per_layer((inner, D)),        # wout
        per_layer((1, D)),            # bout
        per_layer((1, D)),            # gf
        per_layer((1, D)),            # bf
        per_layer((D, mlp)),          # w1
        per_layer((1, mlp)),          # b1
        per_layer((mlp, D)),          # w2
        per_layer((1, D)),            # b2
        pl.BlockSpec((1, D), lambda b, l: (0, 0)),            # gn (constant)
        pl.BlockSpec((1, D), lambda b, l: (0, 0)),            # bn (constant)
    ]

    return pl.pallas_call(
        kernel,
        out_shape=jax.ShapeDtypeStruct(x.shape, x.dtype),
        grid=(B, depth),
        in_specs=in_specs,
        out_specs=pl.BlockSpec((None, N, D), lambda b, l: (b, 0, 0)),
        scratch_shapes=[pltpu.VMEM((N, D), jnp.float32),      # persistent activation
                        pltpu.VMEM((N, inner), jnp.float32)], # per-layer head outputs
        compiler_params=pltpu.CompilerParams(
            dimension_semantics=("parallel", "arbitrary"),
            vmem_limit_bytes=_vmem_budget(stacked, N, D, inner)),
    )(x, *ops)


# ---------------------------- parameter construction ---------------------------

def init_params(key, dim, depth, heads, dim_head, mlp_dim):
    inner = heads * dim_head
    layers = []
    for _ in range(depth):
        key, k0, k1, k2, k3, k4 = jax.random.split(key, 6)
        attn = dict(
            gamma=jnp.ones((1, dim), jnp.float32),
            beta=jnp.zeros((1, dim), jnp.float32),
            wqkv=(jax.random.normal(k0, (dim, 3 * inner), jnp.float32)
                  * (dim ** -0.5)),
            wout=(jax.random.normal(k1, (inner, dim), jnp.float32)
                  * (inner ** -0.5)),
            bout=jax.random.normal(k2, (1, dim), jnp.float32) * 0.01,
        )
        ff = dict(
            gamma=jnp.ones((1, dim), jnp.float32),
            beta=jnp.zeros((1, dim), jnp.float32),
            w1=(jax.random.normal(k3, (dim, mlp_dim), jnp.float32)
                * (dim ** -0.5)),
            b1=jnp.zeros((1, mlp_dim), jnp.float32),
            w2=(jax.random.normal(k4, (mlp_dim, dim), jnp.float32)
                * (mlp_dim ** -0.5)),
            b2=jnp.zeros((1, dim), jnp.float32),
        )
        layers.append((attn, ff))
    norm = dict(gamma=jnp.ones((1, dim), jnp.float32),
                beta=jnp.zeros((1, dim), jnp.float32))
    return dict(layers=layers, norm=norm)


# ------------------------------- pure-JAX reference ----------------------------

def ref_forward(x, params, *, heads, dim_head):
    def ln(t, g, b):
        mu = t.mean(-1, keepdims=True)
        var = ((t - mu) ** 2).mean(-1, keepdims=True)
        return (t - mu) / jnp.sqrt(var + 1e-5) * g + b

    B, N, D = x.shape
    for attn_p, ff_p in params["layers"]:
        xn = ln(x, attn_p["gamma"], attn_p["beta"])
        qkv = xn @ attn_p["wqkv"]
        q, k, v = jnp.split(qkv, 3, axis=-1)
        sh = lambda t: t.reshape(B, N, heads, dim_head).transpose(0, 2, 1, 3)
        q, k, v = sh(q), sh(k), sh(v)
        dots = jnp.einsum("bhid,bhjd->bhij", q, k) * (dim_head ** -0.5)
        a = jax.nn.softmax(dots, axis=-1)
        out = jnp.einsum("bhij,bhjd->bhid", a, v)
        out = out.transpose(0, 2, 1, 3).reshape(B, N, heads * dim_head)
        x = out @ attn_p["wout"] + attn_p["bout"] + x

        xn = ln(x, ff_p["gamma"], ff_p["beta"])
        h = jax.nn.gelu(xn @ ff_p["w1"] + ff_p["b1"], approximate=False)
        x = h @ ff_p["w2"] + ff_p["b2"] + x
    return ln(x, params["norm"]["gamma"], params["norm"]["beta"])


# --------------------------------------- main ----------------------------------

if __name__ == "__main__":
    B, N = 2, 8
    DIM, DEPTH, HEADS, DIM_HEAD, MLP_DIM = 32, 2, 4, 16, 64

    key = jax.random.PRNGKey(0)
    kx, kp = jax.random.split(key)
    x = jax.random.normal(kx, (B, N, DIM), jnp.float32)
    params = init_params(kp, DIM, DEPTH, HEADS, DIM_HEAD, MLP_DIM)

    out = transformer_forward(x, params, heads=HEADS, dim_head=DIM_HEAD)
    out = jax.block_until_ready(out)

    ref = ref_forward(x, params, heads=HEADS, dim_head=DIM_HEAD)
    np.testing.assert_allclose(np.asarray(out), np.asarray(ref),
                               rtol=5e-4, atol=5e-4)

    print("KERNEL_OK")
</pallas_src>

<mosaic_0001>
module attributes {stable_mosaic.version = 11 : i64} {
  func.func @transformer_kernel(%arg0: i32, %arg1: i32, %arg2: memref<1x8x32xf32, #tpu.memory_space<vmem>>, %arg3: memref<1x1x32xf32, #tpu.memory_space<vmem>>, %arg4: memref<1x1x32xf32, #tpu.memory_space<vmem>>, %arg5: memref<1x32x192xf32, #tpu.memory_space<vmem>>, %arg6: memref<1x64x32xf32, #tpu.memory_space<vmem>>, %arg7: memref<1x1x32xf32, #tpu.memory_space<vmem>>, %arg8: memref<1x1x32xf32, #tpu.memory_space<vmem>>, %arg9: memref<1x1x32xf32, #tpu.memory_space<vmem>>, %arg10: memref<1x32x64xf32, #tpu.memory_space<vmem>>, %arg11: memref<1x1x64xf32, #tpu.memory_space<vmem>>, %arg12: memref<1x64x32xf32, #tpu.memory_space<vmem>>, %arg13: memref<1x1x32xf32, #tpu.memory_space<vmem>>, %arg14: memref<1x32xf32, #tpu.memory_space<vmem>>, %arg15: memref<1x32xf32, #tpu.memory_space<vmem>>, %arg16: memref<1x8x32xf32, #tpu.memory_space<vmem>>, %arg17: memref<8x32xf32, #tpu.memory_space<vmem>>, %arg18: memref<8x64xf32, #tpu.memory_space<vmem>>) attributes {dimension_semantics = [#tpu.dimension_semantics<parallel>, #tpu.dimension_semantics<arbitrary>], iteration_bounds = array<i64: 2, 2>, scalar_prefetch = 0 : i64, scratch_operands = 2 : i64, tpu.core_type = #tpu.core_type<tc>, window_params = [{transform_indices = @transform_0, window_bounds = array<i64: 1, 8, 32>}, {transform_indices = @transform_1, window_bounds = array<i64: 1, 1, 32>}, {transform_indices = @transform_2, window_bounds = array<i64: 1, 1, 32>}, {transform_indices = @transform_3, window_bounds = array<i64: 1, 32, 192>}, {transform_indices = @transform_4, window_bounds = array<i64: 1, 64, 32>}, {transform_indices = @transform_5, window_bounds = array<i64: 1, 1, 32>}, {transform_indices = @transform_6, window_bounds = array<i64: 1, 1, 32>}, {transform_indices = @transform_7, window_bounds = array<i64: 1, 1, 32>}, {transform_indices = @transform_8, window_bounds = array<i64: 1, 32, 64>}, {transform_indices = @transform_9, window_bounds = array<i64: 1, 1, 64>}, {transform_indices = @transform_10, window_bounds = array<i64: 1, 64, 32>}, {transform_indices = @transform_11, window_bounds = array<i64: 1, 1, 32>}, {pipeline_mode = #tpu.pipeline_mode<synchronous>, transform_indices = @transform_12, window_bounds = array<i64: 1, 32>}, {pipeline_mode = #tpu.pipeline_mode<synchronous>, transform_indices = @transform_13, window_bounds = array<i64: 1, 32>}, {transform_indices = @transform_14, window_bounds = array<i64: 1, 8, 32>}]} {
    %c0_i32 = arith.constant 0 : i32
    %0 = arith.cmpi eq, %arg1, %c0_i32 : i32
    %1 = arith.extui %0 : i1 to i32
    %c0_i32_0 = arith.constant 0 : i32
    %2 = arith.cmpi ne, %1, %c0_i32_0 : i32
    scf.if %2 {
      %c0_77 = arith.constant 0 : index
      %c0_78 = arith.constant 0 : index
      %c0_79 = arith.constant 0 : index
      %151 = vector.load %arg2[%c0_77, %c0_78, %c0_79] : memref<1x8x32xf32, #tpu.memory_space<vmem>>, vector<1x8x32xf32>
      %152 = vector.shape_cast %151 : vector<1x8x32xf32> to vector<8x32xf32>
      %c0_80 = arith.constant 0 : index
      %c0_81 = arith.constant 0 : index
      %153 = vector.load %arg17[%c0_80, %c0_81] : memref<8x32xf32, #tpu.memory_space<vmem>>, vector<8x32xf32>
      tpu.vector_store %arg17[%c0_80, %c0_81], %152 {strides = array<i32>} : memref<8x32xf32, #tpu.memory_space<vmem>>, vector<8x32xf32>,
    } else {
    }
    %c0 = arith.constant 0 : index
    %c0_1 = arith.constant 0 : index
    %3 = vector.load %arg17[%c0, %c0_1] : memref<8x32xf32, #tpu.memory_space<vmem>>, vector<8x32xf32>
    %c0_2 = arith.constant 0 : index
    %c0_3 = arith.constant 0 : index
    %c0_4 = arith.constant 0 : index
    %4 = vector.load %arg3[%c0_2, %c0_3, %c0_4] : memref<1x1x32xf32, #tpu.memory_space<vmem>>, vector<1x1x32xf32>
    %5 = vector.shape_cast %4 : vector<1x1x32xf32> to vector<1x32xf32>
    %c0_5 = arith.constant 0 : index
    %c0_6 = arith.constant 0 : index
    %c0_7 = arith.constant 0 : index
    %6 = vector.load %arg4[%c0_5, %c0_6, %c0_7] : memref<1x1x32xf32, #tpu.memory_space<vmem>>, vector<1x1x32xf32>
    %7 = vector.shape_cast %6 : vector<1x1x32xf32> to vector<1x32xf32>
    %cst = arith.constant dense<0.000000e+00> : vector<8xf32>
    %8 = vector.multi_reduction <add>, %3, %cst [1] : vector<8x32xf32> to vector<8xf32>
    %9 = vector.shape_cast %8 : vector<8xf32> to vector<8x1xf32>
    %cst_8 = arith.constant 3.200000e+01 : f32
    %10 = vector.broadcast %cst_8 : f32 to vector<8x1xf32>
    %11 = arith.divf %9, %10 : vector<8x1xf32>
    %12 = vector.broadcast %11 : vector<8x1xf32> to vector<8x32xf32>
    %13 = arith.subf %3, %12 : vector<8x32xf32>
    %14 = arith.mulf %13, %13 : vector<8x32xf32>
    %cst_9 = arith.constant dense<0.000000e+00> : vector<8xf32>
    %15 = vector.multi_reduction <add>, %14, %cst_9 [1] : vector<8x32xf32> to vector<8xf32>
    %16 = vector.shape_cast %15 : vector<8xf32> to vector<8x1xf32>
    %cst_10 = arith.constant 3.200000e+01 : f32
    %17 = vector.broadcast %cst_10 : f32 to vector<8x1xf32>
    %18 = arith.divf %16, %17 : vector<8x1xf32>
    %cst_11 = arith.constant 9.99999974E-6 : f32
    %19 = vector.broadcast %cst_11 : f32 to vector<8x1xf32>
    %20 = arith.addf %18, %19 : vector<8x1xf32>
    %21 = math.rsqrt %20 : vector<8x1xf32>
    %22 = vector.broadcast %21 : vector<8x1xf32> to vector<8x32xf32>
    %23 = arith.mulf %13, %22 : vector<8x32xf32>
    %24 = vector.broadcast %5 : vector<1x32xf32> to vector<8x32xf32>
    %25 = arith.mulf %23, %24 : vector<8x32xf32>
    %26 = vector.broadcast %7 : vector<1x32xf32> to vector<8x32xf32>
    %27 = arith.addf %25, %26 : vector<8x32xf32>
    %c0_12 = arith.constant 0 : index
    %c0_13 = arith.constant 0 : index
    %c0_14 = arith.constant 0 : index
    %28 = vector.load %arg5[%c0_12, %c0_13, %c0_14] : memref<1x32x192xf32, #tpu.memory_space<vmem>>, vector<1x32x192xf32>
    %29 = vector.shape_cast %28 : vector<1x32x192xf32> to vector<32x192xf32>
    %cst_15 = arith.constant dense<0.000000e+00> : vector<8x192xf32>
    %30 = tpu.matmul %27, %29, %cst_15 {dimension_numbers = #tpu.dot_dimension_numbers<[1], [0], [0], [1], [0, 0, 1, 1], [], []>} : vector<8x32xf32>, vector<32x192xf32>, vector<8x192xf32> -> vector<8x192xf32>
    %31 = vector.extract_strided_slice %30 {offsets = [0, 0], sizes = [8, 16], strides = [1, 1]} : vector<8x192xf32> to vector<8x16xf32>
    %32 = vector.extract_strided_slice %30 {offsets = [0, 64], sizes = [8, 16], strides = [1, 1]} : vector<8x192xf32> to vector<8x16xf32>
    %33 = vector.extract_strided_slice %30 {offsets = [0, 128], sizes = [8, 16], strides = [1, 1]} : vector<8x192xf32> to vector<8x16xf32>
    %cst_16 = arith.constant dense<0.000000e+00> : vector<8x8xf32>
    %34 = tpu.matmul %31, %32, %cst_16 {dimension_numbers = #tpu.dot_dimension_numbers<[1], [1], [0], [0], [0, 0, 1, 0], [], []>} : vector<8x16xf32>, vector<8x16xf32>, vector<8x8xf32> -> vector<8x8xf32>
    %cst_17 = arith.constant dense<0xFF800000> : vector<8xf32>
    %35 = vector.multi_reduction <maximumf>, %34, %cst_17 [1] : vector<8x8xf32> to vector<8xf32>
    %36 = vector.shape_cast %35 : vector<8xf32> to vector<8x1xf32>
    %37 = vector.broadcast %36 : vector<8x1xf32> to vector<8x8xf32>
    %38 = arith.subf %34, %37 : vector<8x8xf32>
    %39 = math.exp %38 : vector<8x8xf32>
    %cst_18 = arith.constant dense<0.000000e+00> : vector<8xf32>
    %40 = vector.multi_reduction <add>, %39, %cst_18 [1] : vector<8x8xf32> to vector<8xf32>
    %41 = vector.shape_cast %40 : vector<8xf32> to vector<8x1xf32>
    %42 = vector.broadcast %41 : vector<8x1xf32> to vector<8x8xf32>
    %43 = arith.divf %39, %42 : vector<8x8xf32>
    %cst_19 = arith.constant dense<0.000000e+00> : vector<8x16xf32>
    %44 = tpu.matmul %43, %33, %cst_19 {dimension_numbers = #tpu.dot_dimension_numbers<[1], [0], [0], [1], [0, 0, 1, 1], [], []>} : vector<8x8xf32>, vector<8x16xf32>, vector<8x16xf32> -> vector<8x16xf32>
    %c0_20 = arith.constant 0 : index
    %c0_21 = arith.constant 0 : index
    %45 = vector.load %arg18[%c0_20, %c0_21] : memref<8x64xf32, #tpu.memory_space<vmem>>, vector<8x16xf32>
    tpu.vector_store %arg18[%c0_20, %c0_21], %44 {strides = array<i32>} : memref<8x64xf32, #tpu.memory_space<vmem>>, vector<8x16xf32>,
    %46 = vector.extract_strided_slice %30 {offsets = [0, 16], sizes = [8, 16], strides = [1, 1]} : vector<8x192xf32> to vector<8x16xf32>
    %47 = vector.extract_strided_slice %30 {offsets = [0, 80], sizes = [8, 16], strides = [1, 1]} : vector<8x192xf32> to vector<8x16xf32>
    %48 = vector.extract_strided_slice %30 {offsets = [0, 144], sizes = [8, 16], strides = [1, 1]} : vector<8x192xf32> to vector<8x16xf32>
    %cst_22 = arith.constant dense<0.000000e+00> : vector<8x8xf32>
    %49 = tpu.matmul %46, %47, %cst_22 {dimension_numbers = #tpu.dot_dimension_numbers<[1], [1], [0], [0], [0, 0, 1, 0], [], []>} : vector<8x16xf32>, vector<8x16xf32>, vector<8x8xf32> -> vector<8x8xf32>
    %cst_23 = arith.constant dense<0xFF800000> : vector<8xf32>
    %50 = vector.multi_reduction <maximumf>, %49, %cst_23 [1] : vector<8x8xf32> to vector<8xf32>
    %51 = vector.shape_cast %50 : vector<8xf32> to vector<8x1xf32>
    %52 = vector.broadcast %51 : vector<8x1xf32> to vector<8x8xf32>
    %53 = arith.subf %49, %52 : vector<8x8xf32>
    %54 = math.exp %53 : vector<8x8xf32>
    %cst_24 = arith.constant dense<0.000000e+00> : vector<8xf32>
    %55 = vector.multi_reduction <add>, %54, %cst_24 [1] : vector<8x8xf32> to vector<8xf32>
    %56 = vector.shape_cast %55 : vector<8xf32> to vector<8x1xf32>
    %57 = vector.broadcast %56 : vector<8x1xf32> to vector<8x8xf32>
    %58 = arith.divf %54, %57 : vector<8x8xf32>
    %cst_25 = arith.constant dense<0.000000e+00> : vector<8x16xf32>
    %59 = tpu.matmul %58, %48, %cst_25 {dimension_numbers = #tpu.dot_dimension_numbers<[1], [0], [0], [1], [0, 0, 1, 1], [], []>} : vector<8x8xf32>, vector<8x16xf32>, vector<8x16xf32> -> vector<8x16xf32>
    %c0_26 = arith.constant 0 : index
    %c16 = arith.constant 16 : index
    %60 = vector.load %arg18[%c0_26, %c16] : memref<8x64xf32, #tpu.memory_space<vmem>>, vector<8x16xf32>
    tpu.vector_store %arg18[%c0_26, %c16], %59 {strides = array<i32>} : memref<8x64xf32, #tpu.memory_space<vmem>>, vector<8x16xf32>,
    %61 = vector.extract_strided_slice %30 {offsets = [0, 32], sizes = [8, 16], strides = [1, 1]} : vector<8x192xf32> to vector<8x16xf32>
    %62 = vector.extract_strided_slice %30 {offsets = [0, 96], sizes = [8, 16], strides = [1, 1]} : vector<8x192xf32> to vector<8x16xf32>
    %63 = vector.extract_strided_slice %30 {offsets = [0, 160], sizes = [8, 16], strides = [1, 1]} : vector<8x192xf32> to vector<8x16xf32>
    %cst_27 = arith.constant dense<0.000000e+00> : vector<8x8xf32>
    %64 = tpu.matmul %61, %62, %cst_27 {dimension_numbers = #tpu.dot_dimension_numbers<[1], [1], [0], [0], [0, 0, 1, 0], [], []>} : vector<8x16xf32>, vector<8x16xf32>, vector<8x8xf32> -> vector<8x8xf32>
    %cst_28 = arith.constant dense<0xFF800000> : vector<8xf32>
    %65 = vector.multi_reduction <maximumf>, %64, %cst_28 [1] : vector<8x8xf32> to vector<8xf32>
    %66 = vector.shape_cast %65 : vector<8xf32> to vector<8x1xf32>
    %67 = vector.broadcast %66 : vector<8x1xf32> to vector<8x8xf32>
    %68 = arith.subf %64, %67 : vector<8x8xf32>
    %69 = math.exp %68 : vector<8x8xf32>
    %cst_29 = arith.constant dense<0.000000e+00> : vector<8xf32>
    %70 = vector.multi_reduction <add>, %69, %cst_29 [1] : vector<8x8xf32> to vector<8xf32>
    %71 = vector.shape_cast %70 : vector<8xf32> to vector<8x1xf32>
    %72 = vector.broadcast %71 : vector<8x1xf32> to vector<8x8xf32>
    %73 = arith.divf %69, %72 : vector<8x8xf32>
    %cst_30 = arith.constant dense<0.000000e+00> : vector<8x16xf32>
    %74 = tpu.matmul %73, %63, %cst_30 {dimension_numbers = #tpu.dot_dimension_numbers<[1], [0], [0], [1], [0, 0, 1, 1], [], []>} : vector<8x8xf32>, vector<8x16xf32>, vector<8x16xf32> -> vector<8x16xf32>
    %c0_31 = arith.constant 0 : index
    %c32 = arith.constant 32 : index
    %75 = vector.load %arg18[%c0_31, %c32] : memref<8x64xf32, #tpu.memory_space<vmem>>, vector<8x16xf32>
    tpu.vector_store %arg18[%c0_31, %c32], %74 {strides = array<i32>} : memref<8x64xf32, #tpu.memory_space<vmem>>, vector<8x16xf32>,
    %76 = vector.extract_strided_slice %30 {offsets = [0, 48], sizes = [8, 16], strides = [1, 1]} : vector<8x192xf32> to vector<8x16xf32>
    %77 = vector.extract_strided_slice %30 {offsets = [0, 112], sizes = [8, 16], strides = [1, 1]} : vector<8x192xf32> to vector<8x16xf32>
    %78 = vector.extract_strided_slice %30 {offsets = [0, 176], sizes = [8, 16], strides = [1, 1]} : vector<8x192xf32> to vector<8x16xf32>
    %cst_32 = arith.constant dense<0.000000e+00> : vector<8x8xf32>
    %79 = tpu.matmul %76, %77, %cst_32 {dimension_numbers = #tpu.dot_dimension_numbers<[1], [1], [0], [0], [0, 0, 1, 0], [], []>} : vector<8x16xf32>, vector<8x16xf32>, vector<8x8xf32> -> vector<8x8xf32>
    %cst_33 = arith.constant dense<0xFF800000> : vector<8xf32>
    %80 = vector.multi_reduction <maximumf>, %79, %cst_33 [1] : vector<8x8xf32> to vector<8xf32>
    %81 = vector.shape_cast %80 : vector<8xf32> to vector<8x1xf32>
    %82 = vector.broadcast %81 : vector<8x1xf32> to vector<8x8xf32>
    %83 = arith.subf %79, %82 : vector<8x8xf32>
    %84 = math.exp %83 : vector<8x8xf32>
    %cst_34 = arith.constant dense<0.000000e+00> : vector<8xf32>
    %85 = vector.multi_reduction <add>, %84, %cst_34 [1] : vector<8x8xf32> to vector<8xf32>
    %86 = vector.shape_cast %85 : vector<8xf32> to vector<8x1xf32>
    %87 = vector.broadcast %86 : vector<8x1xf32> to vector<8x8xf32>
    %88 = arith.divf %84, %87 : vector<8x8xf32>
    %cst_35 = arith.constant dense<0.000000e+00> : vector<8x16xf32>
    %89 = tpu.matmul %88, %78, %cst_35 {dimension_numbers = #tpu.dot_dimension_numbers<[1], [0], [0], [1], [0, 0, 1, 1], [], []>} : vector<8x8xf32>, vector<8x16xf32>, vector<8x16xf32> -> vector<8x16xf32>
    %c0_36 = arith.constant 0 : index
    %c48 = arith.constant 48 : index
    %90 = vector.load %arg18[%c0_36, %c48] : memref<8x64xf32, #tpu.memory_space<vmem>>, vector<8x16xf32>
    tpu.vector_store %arg18[%c0_36, %c48], %89 {strides = array<i32>} : memref<8x64xf32, #tpu.memory_space<vmem>>, vector<8x16xf32>,
    %c0_37 = arith.constant 0 : index
    %c0_38 = arith.constant 0 : index
    %91 = vector.load %arg18[%c0_37, %c0_38] : memref<8x64xf32, #tpu.memory_space<vmem>>, vector<8x64xf32>
    %c0_39 = arith.constant 0 : index
    %c0_40 = arith.constant 0 : index
    %c0_41 = arith.constant 0 : index
    %92 = vector.load %arg6[%c0_39, %c0_40, %c0_41] : memref<1x64x32xf32, #tpu.memory_space<vmem>>, vector<1x64x32xf32>
    %93 = vector.shape_cast %92 : vector<1x64x32xf32> to vector<64x32xf32>
    %cst_42 = arith.constant dense<0.000000e+00> : vector<8x32xf32>
    %94 = tpu.matmul %91, %93, %cst_42 {dimension_numbers = #tpu.dot_dimension_numbers<[1], [0], [0], [1], [0, 0, 1, 1], [], []>} : vector<8x64xf32>, vector<64x32xf32>, vector<8x32xf32> -> vector<8x32xf32>
    %c0_43 = arith.constant 0 : index
    %c0_44 = arith.constant 0 : index
    %c0_45 = arith.constant 0 : index
    %95 = vector.load %arg7[%c0_43, %c0_44, %c0_45] : memref<1x1x32xf32, #tpu.memory_space<vmem>>, vector<1x1x32xf32>
    %96 = vector.shape_cast %95 : vector<1x1x32xf32> to vector<1x32xf32>
    %97 = vector.broadcast %96 : vector<1x32xf32> to vector<8x32xf32>
    %98 = arith.addf %94, %97 : vector<8x32xf32>
    %99 = arith.addf %98, %3 : vector<8x32xf32>
    %c0_46 = arith.constant 0 : index
    %c0_47 = arith.constant 0 : index
    %c0_48 = arith.constant 0 : index
    %100 = vector.load %arg8[%c0_46, %c0_47, %c0_48] : memref<1x1x32xf32, #tpu.memory_space<vmem>>, vector<1x1x32xf32>
    %101 = vector.shape_cast %100 : vector<1x1x32xf32> to vector<1x32xf32>
    %c0_49 = arith.constant 0 : index
    %c0_50 = arith.constant 0 : index
    %c0_51 = arith.constant 0 : index
    %102 = vector.load %arg9[%c0_49, %c0_50, %c0_51] : memref<1x1x32xf32, #tpu.memory_space<vmem>>, vector<1x1x32xf32>
    %103 = vector.shape_cast %102 : vector<1x1x32xf32> to vector<1x32xf32>
    %cst_52 = arith.constant dense<0.000000e+00> : vector<8xf32>
    %104 = vector.multi_reduction <add>, %99, %cst_52 [1] : vector<8x32xf32> to vector<8xf32>
    %105 = vector.shape_cast %104 : vector<8xf32> to vector<8x1xf32>
    %cst_53 = arith.constant 3.200000e+01 : f32
    %106 = vector.broadcast %cst_53 : f32 to vector<8x1xf32>
    %107 = arith.divf %105, %106 : vector<8x1xf32>
    %108 = vector.broadcast %107 : vector<8x1xf32> to vector<8x32xf32>
    %109 = arith.subf %99, %108 : vector<8x32xf32>
    %110 = arith.mulf %109, %109 : vector<8x32xf32>
    %cst_54 = arith.constant dense<0.000000e+00> : vector<8xf32>
    %111 = vector.multi_reduction <add>, %110, %cst_54 [1] : vector<8x32xf32> to vector<8xf32>
    %112 = vector.shape_cast %111 : vector<8xf32> to vector<8x1xf32>
    %cst_55 = arith.constant 3.200000e+01 : f32
    %113 = vector.broadcast %cst_55 : f32 to vector<8x1xf32>
    %114 = arith.divf %112, %113 : vector<8x1xf32>
    %cst_56 = arith.constant 9.99999974E-6 : f32
    %115 = vector.broadcast %cst_56 : f32 to vector<8x1xf32>
    %116 = arith.addf %114, %115 : vector<8x1xf32>
    %117 = math.rsqrt %116 : vector<8x1xf32>
    %118 = vector.broadcast %117 : vector<8x1xf32> to vector<8x32xf32>
    %119 = arith.mulf %109, %118 : vector<8x32xf32>
    %120 = vector.broadcast %101 : vector<1x32xf32> to vector<8x32xf32>
    %121 = arith.mulf %119, %120 : vector<8x32xf32>
    %122 = vector.broadcast %103 : vector<1x32xf32> to vector<8x32xf32>
    %123 = arith.addf %121, %122 : vector<8x32xf32>
    %c0_57 = arith.constant 0 : index
    %c0_58 = arith.constant 0 : index
    %c0_59 = arith.constant 0 : index
    %124 = vector.load %arg10[%c0_57, %c0_58, %c0_59] : memref<1x32x64xf32, #tpu.memory_space<vmem>>, vector<1x32x64xf32>
    %125 = vector.shape_cast %124 : vector<1x32x64xf32> to vector<32x64xf32>
    %cst_60 = arith.constant dense<0.000000e+00> : vector<8x64xf32>
    %126 = tpu.matmul %123, %125, %cst_60 {dimension_numbers = #tpu.dot_dimension_numbers<[1], [0], [0], [1], [0, 0, 1, 1], [], []>} : vector<8x32xf32>, vector<32x64xf32>, vector<8x64xf32> -> vector<8x64xf32>
    %c0_61 = arith.constant 0 : index
    %c0_62 = arith.constant 0 : index
    %c0_63 = arith.constant 0 : index
    %127 = vector.load %arg11[%c0_61, %c0_62, %c0_63] : memref<1x1x64xf32, #tpu.memory_space<vmem>>, vector<1x1x64xf32>
    %128 = vector.shape_cast %127 : vector<1x1x64xf32> to vector<1x64xf32>
    %129 = vector.broadcast %128 : vector<1x64xf32> to vector<8x64xf32>
    %130 = arith.addf %126, %129 : vector<8x64xf32>
    %cst_64 = arith.constant 5.000000e-01 : f32
    %131 = vector.broadcast %cst_64 : f32 to vector<8x64xf32>
    %132 = arith.mulf %131, %130 : vector<8x64xf32>
    %cst_65 = arith.constant 0.707106769 : f32
    %133 = vector.broadcast %cst_65 : f32 to vector<8x64xf32>
    %134 = arith.mulf %130, %133 : vector<8x64xf32>
    %135 = math.erf %134 : vector<8x64xf32>
    %cst_66 = arith.constant 1.000000e+00 : f32
    %136 = vector.broadcast %cst_66 : f32 to vector<8x64xf32>
    %137 = arith.addf %136, %135 : vector<8x64xf32>
    %138 = arith.mulf %132, %137 : vector<8x64xf32>
    %c0_67 = arith.constant 0 : index
    %c0_68 = arith.constant 0 : index
    %c0_69 = arith.constant 0 : index
    %139 = vector.load %arg12[%c0_67, %c0_68, %c0_69] : memref<1x64x32xf32, #tpu.memory_space<vmem>>, vector<1x64x32xf32>
    %140 = vector.shape_cast %139 : vector<1x64x32xf32> to vector<64x32xf32>
    %cst_70 = arith.constant dense<0.000000e+00> : vector<8x32xf32>
    %141 = tpu.matmul %138, %140, %cst_70 {dimension_numbers = #tpu.dot_dimension_numbers<[1], [0], [0], [1], [0, 0, 1, 1], [], []>} : vector<8x64xf32>, vector<64x32xf32>, vector<8x32xf32> -> vector<8x32xf32>
    %c0_71 = arith.constant 0 : index
    %c0_72 = arith.constant 0 : index
    %c0_73 = arith.constant 0 : index
    %142 = vector.load %arg13[%c0_71, %c0_72, %c0_73] : memref<1x1x32xf32, #tpu.memory_space<vmem>>, vector<1x1x32xf32>
    %143 = vector.shape_cast %142 : vector<1x1x32xf32> to vector<1x32xf32>
    %144 = vector.broadcast %143 : vector<1x32xf32> to vector<8x32xf32>
    %145 = arith.addf %141, %144 : vector<8x32xf32>
    %146 = arith.addf %145, %99 : vector<8x32xf32>
    %c0_74 = arith.constant 0 : index
    %c0_75 = arith.constant 0 : index
    %147 = vector.load %arg17[%c0_74, %c0_75] : memref<8x32xf32, #tpu.memory_space<vmem>>, vector<8x32xf32>
    tpu.vector_store %arg17[%c0_74, %c0_75], %146 {strides = array<i32>} : memref<8x32xf32, #tpu.memory_space<vmem>>, vector<8x32xf32>,
    %c1_i32 = arith.constant 1 : i32
    %148 = arith.cmpi eq, %arg1, %c1_i32 : i32
    %149 = arith.extui %148 : i1 to i32
    %c0_i32_76 = arith.constant 0 : i32
    %150 = arith.cmpi ne, %149, %c0_i32_76 : i32
    scf.if %150 {
      %c0_77 = arith.constant 0 : index
      %c0_78 = arith.constant 0 : index
      %151 = vector.load %arg14[%c0_77, %c0_78] : memref<1x32xf32, #tpu.memory_space<vmem>>, vector<1x32xf32>
      %c0_79 = arith.constant 0 : index
      %c0_80 = arith.constant 0 : index
      %152 = vector.load %arg15[%c0_79, %c0_80] : memref<1x32xf32, #tpu.memory_space<vmem>>, vector<1x32xf32>
      %cst_81 = arith.constant dense<0.000000e+00> : vector<8xf32>
      %153 = vector.multi_reduction <add>, %146, %cst_81 [1] : vector<8x32xf32> to vector<8xf32>
      %154 = vector.shape_cast %153 : vector<8xf32> to vector<8x1xf32>
      %cst_82 = arith.constant 3.200000e+01 : f32
      %155 = vector.broadcast %cst_82 : f32 to vector<8x1xf32>
      %156 = arith.divf %154, %155 : vector<8x1xf32>
      %157 = vector.broadcast %156 : vector<8x1xf32> to vector<8x32xf32>
      %158 = arith.subf %146, %157 : vector<8x32xf32>
      %159 = arith.mulf %158, %158 : vector<8x32xf32>
      %cst_83 = arith.constant dense<0.000000e+00> : vector<8xf32>
      %160 = vector.multi_reduction <add>, %159, %cst_83 [1] : vector<8x32xf32> to vector<8xf32>
      %161 = vector.shape_cast %160 : vector<8xf32> to vector<8x1xf32>
      %cst_84 = arith.constant 3.200000e+01 : f32
      %162 = vector.broadcast %cst_84 : f32 to vector<8x1xf32>
      %163 = arith.divf %161, %162 : vector<8x1xf32>
      %cst_85 = arith.constant 9.99999974E-6 : f32
      %164 = vector.broadcast %cst_85 : f32 to vector<8x1xf32>
      %165 = arith.addf %163, %164 : vector<8x1xf32>
      %166 = math.rsqrt %165 : vector<8x1xf32>
      %167 = vector.broadcast %166 : vector<8x1xf32> to vector<8x32xf32>
      %168 = arith.mulf %158, %167 : vector<8x32xf32>
      %169 = vector.broadcast %151 : vector<1x32xf32> to vector<8x32xf32>
      %170 = arith.mulf %168, %169 : vector<8x32xf32>
      %171 = vector.broadcast %152 : vector<1x32xf32> to vector<8x32xf32>
      %172 = arith.addf %170, %171 : vector<8x32xf32>
      %c0_86 = arith.constant 0 : index
      %c0_87 = arith.constant 0 : index
      %c0_88 = arith.constant 0 : index
      %173 = vector.load %arg16[%c0_86, %c0_87, %c0_88] : memref<1x8x32xf32, #tpu.memory_space<vmem>>, vector<1x8x32xf32>
      %174 = vector.shape_cast %173 : vector<1x8x32xf32> to vector<8x32xf32>
      %175 = vector.shape_cast %172 : vector<8x32xf32> to vector<1x8x32xf32>
      tpu.vector_store %arg16[%c0_86, %c0_87, %c0_88], %175 {strides = array<i32>} : memref<1x8x32xf32, #tpu.memory_space<vmem>>, vector<1x8x32xf32>,
    } else {
    }
    return
  }
  func.func @transform_0(%arg0: i32, %arg1: i32) -> (i32, i32, i32) {
    %c0_i32 = arith.constant 0 : i32
    %c0_i32_0 = arith.constant 0 : i32
    %c0_i32_1 = arith.constant 0 : i32
    return %arg0, %c0_i32, %c0_i32_0 : i32, i32, i32
  }
  func.func @transform_1(%arg0: i32, %arg1: i32) -> (i32, i32, i32) {
    %c0_i32 = arith.constant 0 : i32
    %c0_i32_0 = arith.constant 0 : i32
    %c0_i32_1 = arith.constant 0 : i32
    return %arg1, %c0_i32, %c0_i32_0 : i32, i32, i32
  }
  func.func @transform_2(%arg0: i32, %arg1: i32) -> (i32, i32, i32) {
    %c0_i32 = arith.constant 0 : i32
    %c0_i32_0 = arith.constant 0 : i32
    %c0_i32_1 = arith.constant 0 : i32
    return %arg1, %c0_i32, %c0_i32_0 : i32, i32, i32
  }
  func.func @transform_3(%arg0: i32, %arg1: i32) -> (i32, i32, i32) {
    %c0_i32 = arith.constant 0 : i32
    %c0_i32_0 = arith.constant 0 : i32
    %c0_i32_1 = arith.constant 0 : i32
    return %arg1, %c0_i32, %c0_i32_0 : i32, i32, i32
  }
  func.func @transform_4(%arg0: i32, %arg1: i32) -> (i32, i32, i32) {
    %c0_i32 = arith.constant 0 : i32
    %c0_i32_0 = arith.constant 0 : i32
    %c0_i32_1 = arith.constant 0 : i32
    return %arg1, %c0_i32, %c0_i32_0 : i32, i32, i32
  }
  func.func @transform_5(%arg0: i32, %arg1: i32) -> (i32, i32, i32) {
    %c0_i32 = arith.constant 0 : i32
    %c0_i32_0 = arith.constant 0 : i32
    %c0_i32_1 = arith.constant 0 : i32
    return %arg1, %c0_i32, %c0_i32_0 : i32, i32, i32
  }
  func.func @transform_6(%arg0: i32, %arg1: i32) -> (i32, i32, i32) {
    %c0_i32 = arith.constant 0 : i32
    %c0_i32_0 = arith.constant 0 : i32
    %c0_i32_1 = arith.constant 0 : i32
    return %arg1, %c0_i32, %c0_i32_0 : i32, i32, i32
  }
  func.func @transform_7(%arg0: i32, %arg1: i32) -> (i32, i32, i32) {
    %c0_i32 = arith.constant 0 : i32
    %c0_i32_0 = arith.constant 0 : i32
    %c0_i32_1 = arith.constant 0 : i32
    return %arg1, %c0_i32, %c0_i32_0 : i32, i32, i32
  }
  func.func @transform_8(%arg0: i32, %arg1: i32) -> (i32, i32, i32) {
    %c0_i32 = arith.constant 0 : i32
    %c0_i32_0 = arith.constant 0 : i32
    %c0_i32_1 = arith.constant 0 : i32
    return %arg1, %c0_i32, %c0_i32_0 : i32, i32, i32
  }
  func.func @transform_9(%arg0: i32, %arg1: i32) -> (i32, i32, i32) {
    %c0_i32 = arith.constant 0 : i32
    %c0_i32_0 = arith.constant 0 : i32
    %c0_i32_1 = arith.constant 0 : i32
    return %arg1, %c0_i32, %c0_i32_0 : i32, i32, i32
  }
  func.func @transform_10(%arg0: i32, %arg1: i32) -> (i32, i32, i32) {
    %c0_i32 = arith.constant 0 : i32
    %c0_i32_0 = arith.constant 0 : i32
    %c0_i32_1 = arith.constant 0 : i32
    return %arg1, %c0_i32, %c0_i32_0 : i32, i32, i32
  }
  func.func @transform_11(%arg0: i32, %arg1: i32) -> (i32, i32, i32) {
    %c0_i32 = arith.constant 0 : i32
    %c0_i32_0 = arith.constant 0 : i32
    %c0_i32_1 = arith.constant 0 : i32
    return %arg1, %c0_i32, %c0_i32_0 : i32, i32, i32
  }
  func.func @transform_12(%arg0: i32, %arg1: i32) -> (i32, i32) {
    %c0_i32 = arith.constant 0 : i32
    %c0_i32_0 = arith.constant 0 : i32
    %c0_i32_1 = arith.constant 0 : i32
    return %c0_i32, %c0_i32_0 : i32, i32
  }
  func.func @transform_13(%arg0: i32, %arg1: i32) -> (i32, i32) {
    %c0_i32 = arith.constant 0 : i32
    %c0_i32_0 = arith.constant 0 : i32
    %c0_i32_1 = arith.constant 0 : i32
    return %c0_i32, %c0_i32_0 : i32, i32
  }
  func.func @transform_14(%arg0: i32, %arg1: i32) -> (i32, i32, i32) {
    %c0_i32 = arith.constant 0 : i32
    %c0_i32_0 = arith.constant 0 : i32
    %c0_i32_1 = arith.constant 0 : i32
    return %arg0, %c0_i32, %c0_i32_0 : i32, i32, i32
  }
}

</mosaic_0001>

<llo_original>
// kernel: tpu_custom_call.1
$region0: #{tpu_custom_call.1}
  #allocation0 [shape = 'u32[]', space=smem, size = 0x4, offset = 0x4, fixed_abs, tag = 'smem constant byte address 0x4 - core index']
  #allocation1 [shape = 'u32[144,128]{1,0:T(1,128)}', space=vmem, size = 0x12000, scoped, tag = 'internal scratch']
  #allocation2 [shape = 'f32[8,32]{1,0:T(8,128)}', space=vmem, size = 0x1000, scoped, tag = 'scratch operand']
  #allocation3 [shape = 'f32[8,64]{1,0:T(8,128)}', space=vmem, size = 0x1000, scoped, tag = 'scratch operand']
  %s0 = inlined_call_operand.vmem [shape: f32[2,8,32], index: 0, kind: input, shape index: {}]
  %s1 = inlined_call_operand.vmem [shape: f32[2,1,32], index: 1, kind: input, shape index: {}]
  %s2 = inlined_call_operand.vmem [shape: f32[2,1,32], index: 2, kind: input, shape index: {}]
  %s3 = inlined_call_operand.vmem [shape: f32[2,32,192], index: 3, kind: input, shape index: {}]
  %s4 = inlined_call_operand.vmem [shape: f32[2,64,32], index: 4, kind: input, shape index: {}]
  %s5 = inlined_call_operand.vmem [shape: f32[2,1,32], index: 5, kind: input, shape index: {}]
  %s6 = inlined_call_operand.vmem [shape: f32[2,1,32], index: 6, kind: input, shape index: {}]
  %s7 = inlined_call_operand.vmem [shape: f32[2,1,32], index: 7, kind: input, shape index: {}]
  %s8 = inlined_call_operand.vmem [shape: f32[2,32,64], index: 8, kind: input, shape index: {}]
  %s9 = inlined_call_operand.vmem [shape: f32[2,1,64], index: 9, kind: input, shape index: {}]
  %s10 = inlined_call_operand.vmem [shape: f32[2,64,32], index: 10, kind: input, shape index: {}]
  %s11 = inlined_call_operand.vmem [shape: f32[2,1,32], index: 11, kind: input, shape index: {}]
  %s12 = inlined_call_operand.vmem [shape: f32[1,32], index: 12, kind: input, shape index: {}]
  %s13 = inlined_call_operand.vmem [shape: f32[1,32], index: 13, kind: input, shape index: {}]
  %s14 = inlined_call_operand.hbm [shape: f32[2,8,32], index: 14, kind: output, shape index: {}]
  %s15 = sld [smem:[#allocation0]]
  $region97: #{tpu_custom_call.1} parent=0
    _
  %s17 = ssub.s32 1, %s15
  %s18 = scalar_select 0, %s17, %s15
  $region1: #{tpu_custom_call.1} parent=0
    #allocation4 [shape = 'u8[8192]{0}', space=vmem, size = 0x2000, scoped, tag = 'output window, operand 0']
    #allocation5 [shape = 's32[2]{0}', space=sflag, size = 0x8, scoped, tag = 'scoped memory for tpu_custom_call.1']
    %19 = vsyncpa [#allocation5], 0
    %s20 = scalar_lea.sflag [#allocation5], 1
    %21 = vsyncpa %s20, 0
    loop: start=0, step=1, limit=6
    $region2: #{tpu_custom_call.1} parent=1 // loop_pre_header
      _
    $region3: #{tpu_custom_call.1} parent=1 // loop_header
      %s23 = sphi 0, %s27
      %p24 = scmp.ge.s32.totalorder %s23, 6
      %s30 = sphi 0, %s42
      %s31 = sphi 0, %s38
      %s32 = sphi 0, %s30
      %s33 = sphi 0, %s31
      %s34 = sphi 0, %s32
      %s35 = sphi 0, %s33
      %s45 = sphi 0, %s47
      %s48 = sphi 0, %s45
      %s49 = sphi 0, %s48
      %s65 = sphi 0, %s49
      %s71 = sphi 0, %s73
      %s74 = sphi 0, %s71
      %s75 = sphi 0, %s74
      %s91 = sphi 0, %s75
      %s97 = sphi 0, %s99
      %s100 = sphi 0, %s97
      %s101 = sphi 0, %s100
      %s117 = sphi 0, %s101
      %s123 = sphi 0, %s125
      %s126 = sphi 0, %s123
      %s127 = sphi 0, %s126
      %s143 = sphi 0, %s127
      %s149 = sphi 0, %s151
      %s152 = sphi 0, %s149
      %s153 = sphi 0, %s152
      %s169 = sphi 0, %s153
      %s175 = sphi 0, %s177
      %s178 = sphi 0, %s175
      %s179 = sphi 0, %s178
      %s195 = sphi 0, %s179
      %s201 = sphi 0, %s203
      %s204 = sphi 0, %s201
      %s205 = sphi 0, %s204
      %s221 = sphi 0, %s205
      %s227 = sphi 0, %s229
      %s230 = sphi 0, %s227
      %s231 = sphi 0, %s230
      %s247 = sphi 0, %s231
      %s253 = sphi 0, %s255
      %s256 = sphi 0, %s253
      %s257 = sphi 0, %s256
      %s273 = sphi 0, %s257
      %s279 = sphi 0, %s281
      %s282 = sphi 0, %s279
      %s283 = sphi 0, %s282
      %s299 = sphi 0, %s283
      %s305 = sphi 0, %s307
      %s308 = sphi 0, %s305
      %s309 = sphi 0, %s308
      %s325 = sphi 0, %s309
      %s331 = sphi 0, %s333
      %s334 = sphi 0, %s331
      %s335 = sphi 0, %s334
      %s351 = sphi 0, %s335
      %s355 = sphi 0, %s355
      %s357 = sphi 0, %s355
      %s358 = sphi 0, %s357
      %s372 = sphi 0, %s358
      %s376 = sphi 0, %s376
      %s378 = sphi 0, %s376
      %s379 = sphi 0, %s378
      %s393 = sphi 0, %s379
      %s399 = sphi 0, %s401
      %s402 = sphi 0, %s399
      %s403 = sphi 0, %s402
      %s419 = sphi 0, %s403
    $region4: #{tpu_custom_call.1} parent=1 // loop_header_branch
      %26 = sbr.rel (%p24) target = $region8
    $region5: #{tpu_custom_call.1} parent=1 // loop_body
      %s28 = ssub.s32 %s23, 1
      %s29 = ssub.s32 %s23, 2
      %s36 = sadd.s32 1, %s31
      %p37 = scmp.ge.s32.totalorder %s36, 2
      %s38 = scalar_select %p37, 0, %s36
      %s39 = sadd.s32 1, %s30
      %s40 = scalar_select %p37, %s39, %s30
      %p41 = scmp.ge.s32.totalorder %s40, 2
      %s42 = scalar_select %p41, 0, %s40
      %s43 = ssub.s32 %s30, %s42
      %p44 = scmp.eq.s32.totalorder %s43, 0
      %s46 = sadd.s32 %s45, 1
      %s47 = scalar_select %p44, %s45, %s46
      %p50 = pneg %p44
      %p51 = scmp.eq.s32.totalorder %s23, 3
      %p52 = por %p50, %p51
      %p53 = scmp.ne.s32.totalorder %s45, %s48
      %p54 = scmp.eq.s32.totalorder %s23, 0
      %p55 = por %p53, %p54
      %p56 = scmp.ne.s32.totalorder %s45, %s48
      %p57 = scmp.eq.s32.totalorder %s28, 3
      %p58 = por %p56, %p57
      %p59 = scmp.ne.s32.totalorder %s48, %s49
      %p60 = scmp.eq.s32.totalorder %s28, 0
      %p61 = por %p59, %p60
      %p62 = scmp.ne.s32.totalorder %s48, %s49
      %p63 = scmp.eq.s32.totalorder %s29, 3
      %p64 = por %p62, %p63
      %p66 = scmp.ne.s32.totalorder %s49, %s65
      %p67 = scmp.eq.s32.totalorder %s29, 0
      %p68 = por %p66, %p67
      %s69 = ssub.s32 %s31, %s38
      %p70 = scmp.eq.s32.totalorder %s69, 0
      %s72 = sadd.s32 %s71, 1
      %s73 = scalar_select %p70, %s71, %s72
      %p76 = pneg %p70
      %p77 = scmp.eq.s32.totalorder %s23, 3
      %p78 = por %p76, %p77
      %p79 = scmp.ne.s32.totalorder %s71, %s74
      %p80 = scmp.eq.s32.totalorder %s23, 0
      %p81 = por %p79, %p80
      %p82 = scmp.ne.s32.totalorder %s71, %s74
      %p83 = scmp.eq.s32.totalorder %s28, 3
      %p84 = por %p82, %p83
      %p85 = scmp.ne.s32.totalorder %s74, %s75
      %p86 = scmp.eq.s32.totalorder %s28, 0
      %p87 = por %p85, %p86
      %p88 = scmp.ne.s32.totalorder %s74, %s75
      %p89 = scmp.eq.s32.totalorder %s29, 3
      %p90 = por %p88, %p89
      %p92 = scmp.ne.s32.totalorder %s75, %s91
      %p93 = scmp.eq.s32.totalorder %s29, 0
      %p94 = por %p92, %p93
      %s95 = ssub.s32 %s31, %s38
      %p96 = scmp.eq.s32.totalorder %s95, 0
      %s98 = sadd.s32 %s97, 1
      %s99 = scalar_select %p96, %s97, %s98
      %p102 = pneg %p96
      %p103 = scmp.eq.s32.totalorder %s23, 3
      %p104 = por %p102, %p103
      %p105 = scmp.ne.s32.totalorder %s97, %s100
      %p106 = scmp.eq.s32.totalorder %s23, 0
      %p107 = por %p105, %p106
      %p108 = scmp.ne.s32.totalorder %s97, %s100
      %p109 = scmp.eq.s32.totalorder %s28, 3
      %p110 = por %p108, %p109
      %p111 = scmp.ne.s32.totalorder %s100, %s101
      %p112 = scmp.eq.s32.totalorder %s28, 0
      %p113 = por %p111, %p112
      %p114 = scmp.ne.s32.totalorder %s100, %s101
      %p115 = scmp.eq.s32.totalorder %s29, 3
      %p116 = por %p114, %p115
      %p118 = scmp.ne.s32.totalorder %s101, %s117
      %p119 = scmp.eq.s32.totalorder %s29, 0
      %p120 = por %p118, %p119
      %s121 = ssub.s32 %s31, %s38
      %p122 = scmp.eq.s32.totalorder %s121, 0
      %s124 = sadd.s32 %s123, 1
      %s125 = scalar_select %p122, %s123, %s124
      %p128 = pneg %p122
      %p129 = scmp.eq.s32.totalorder %s23, 3
      %p130 = por %p128, %p129
      %p131 = scmp.ne.s32.totalorder %s123, %s126
      %p132 = scmp.eq.s32.totalorder %s23, 0
      %p133 = por %p131, %p132
      %p134 = scmp.ne.s32.totalorder %s123, %s126
      %p135 = scmp.eq.s32.totalorder %s28, 3
      %p136 = por %p134, %p135
      %p137 = scmp.ne.s32.totalorder %s126, %s127
      %p138 = scmp.eq.s32.totalorder %s28, 0
      %p139 = por %p137, %p138
      %p140 = scmp.ne.s32.totalorder %s126, %s127
      %p141 = scmp.eq.s32.totalorder %s29, 3
      %p142 = por %p140, %p141
      %p144 = scmp.ne.s32.totalorder %s127, %s143
      %p145 = scmp.eq.s32.totalorder %s29, 0
      %p146 = por %p144, %p145
      %s147 = ssub.s32 %s31, %s38
      %p148 = scmp.eq.s32.totalorder %s147, 0
      %s150 = sadd.s32 %s149, 1
      %s151 = scalar_select %p148, %s149, %s150
      %p154 = pneg %p148
      %p155 = scmp.eq.s32.totalorder %s23, 3
      %p156 = por %p154, %p155
      %p157 = scmp.ne.s32.totalorder %s149, %s152
      %p158 = scmp.eq.s32.totalorder %s23, 0
      %p159 = por %p157, %p158
      %p160 = scmp.ne.s32.totalorder %s149, %s152
      %p161 = scmp.eq.s32.totalorder %s28, 3
      %p162 = por %p160, %p161
      %p163 = scmp.ne.s32.totalorder %s152, %s153
      %p164 = scmp.eq.s32.totalorder %s28, 0
      %p165 = por %p163, %p164
      %p166 = scmp.ne.s32.totalorder %s152, %s153
      %p167 = scmp.eq.s32.totalorder %s29, 3
      %p168 = por %p166, %p167
      %p170 = scmp.ne.s32.totalorder %s153, %s169
      %p171 = scmp.eq.s32.totalorder %s29, 0
      %p172 = por %p170, %p171
      %s173 = ssub.s32 %s31, %s38
      %p174 = scmp.eq.s32.totalorder %s173, 0
      %s176 = sadd.s32 %s175, 1
      %s177 = scalar_select %p174, %s175, %s176
      %p180 = pneg %p174
      %p181 = scmp.eq.s32.totalorder %s23, 3
      %p182 = por %p180, %p181
      %p183 = scmp.ne.s32.totalorder %s175, %s178
      %p184 = scmp.eq.s32.totalorder %s23, 0
      %p185 = por %p183, %p184
      %p186 = scmp.ne.s32.totalorder %s175, %s178
      %p187 = scmp.eq.s32.totalorder %s28, 3
      %p188 = por %p186, %p187
      %p189 = scmp.ne.s32.totalorder %s178, %s179
      %p190 = scmp.eq.s32.totalorder %s28, 0
      %p191 = por %p189, %p190
      %p192 = scmp.ne.s32.totalorder %s178, %s179
      %p193 = scmp.eq.s32.totalorder %s29, 3
      %p194 = por %p192, %p193
      %p196 = scmp.ne.s32.totalorder %s179, %s195
      %p197 = scmp.eq.s32.totalorder %s29, 0
      %p198 = por %p196, %p197
      %s199 = ssub.s32 %s31, %s38
      %p200 = scmp.eq.s32.totalorder %s199, 0
      %s202 = sadd.s32 %s201, 1
      %s203 = scalar_select %p200, %s201, %s202
      %p206 = pneg %p200
      %p207 = scmp.eq.s32.totalorder %s23, 3
      %p208 = por %p206, %p207
      %p209 = scmp.ne.s32.totalorder %s201, %s204
      %p210 = scmp.eq.s32.totalorder %s23, 0
      %p211 = por %p209, %p210
      %p212 = scmp.ne.s32.totalorder %s201, %s204
      %p213 = scmp.eq.s32.totalorder %s28, 3
      %p214 = por %p212, %p213
      %p215 = scmp.ne.s32.totalorder %s204, %s205
      %p216 = scmp.eq.s32.totalorder %s28, 0
      %p217 = por %p215, %p216
      %p218 = scmp.ne.s32.totalorder %s204, %s205
      %p219 = scmp.eq.s32.totalorder %s29, 3
      %p220 = por %p218, %p219
      %p222 = scmp.ne.s32.totalorder %s205, %s221
      %p223 = scmp.eq.s32.totalorder %s29, 0
      %p224 = por %p222, %p223
      %s225 = ssub.s32 %s31, %s38
      %p226 = scmp.eq.s32.totalorder %s225, 0
      %s228 = sadd.s32 %s227, 1
      %s229 = scalar_select %p226, %s227, %s228
      %p232 = pneg %p226
      %p233 = scmp.eq.s32.totalorder %s23, 3
      %p234 = por %p232, %p233
      %p235 = scmp.ne.s32.totalorder %s227, %s230
      %p236 = scmp.eq.s32.totalorder %s23, 0
      %p237 = por %p235, %p236
      %p238 = scmp.ne.s32.totalorder %s227, %s230
      %p239 = scmp.eq.s32.totalorder %s28, 3
      %p240 = por %p238, %p239
      %p241 = scmp.ne.s32.totalorder %s230, %s231
      %p242 = scmp.eq.s32.totalorder %s28, 0
      %p243 = por %p241, %p242
      %p244 = scmp.ne.s32.totalorder %s230, %s231
      %p245 = scmp.eq.s32.totalorder %s29, 3
      %p246 = por %p244, %p245
      %p248 = scmp.ne.s32.totalorder %s231, %s247
      %p249 = scmp.eq.s32.totalorder %s29, 0
      %p250 = por %p248, %p249
      %s251 = ssub.s32 %s31, %s38
      %p252 = scmp.eq.s32.totalorder %s251, 0
      %s254 = sadd.s32 %s253, 1
      %s255 = scalar_select %p252, %s253, %s254
      %p258 = pneg %p252
      %p259 = scmp.eq.s32.totalorder %s23, 3
      %p260 = por %p258, %p259
      %p261 = scmp.ne.s32.totalorder %s253, %s256
      %p262 = scmp.eq.s32.totalorder %s23, 0
      %p263 = por %p261, %p262
      %p264 = scmp.ne.s32.totalorder %s253, %s256
      %p265 = scmp.eq.s32.totalorder %s28, 3
      %p266 = por %p264, %p265
      %p267 = scmp.ne.s32.totalorder %s256, %s257
      %p268 = scmp.eq.s32.totalorder %s28, 0
      %p269 = por %p267, %p268
      %p270 = scmp.ne.s32.totalorder %s256, %s257
      %p271 = scmp.eq.s32.totalorder %s29, 3
      %p272 = por %p270, %p271
      %p274 = scmp.ne.s32.totalorder %s257, %s273
      %p275 = scmp.eq.s32.totalorder %s29, 0
      %p276 = por %p274, %p275
      %s277 = ssub.s32 %s31, %s38
      %p278 = scmp.eq.s32.totalorder %s277, 0
      %s280 = sadd.s32 %s279, 1
      %s281 = scalar_select %p278, %s279, %s280
      %p284 = pneg %p278
      %p285 = scmp.eq.s32.totalorder %s23, 3
      %p286 = por %p284, %p285
      %p287 = scmp.ne.s32.totalorder %s279, %s282
      %p288 = scmp.eq.s32.totalorder %s23, 0
      %p289 = por %p287, %p288
      %p290 = scmp.ne.s32.totalorder %s279, %s282
      %p291 = scmp.eq.s32.totalorder %s28, 3
      %p292 = por %p290, %p291
      %p293 = scmp.ne.s32.totalorder %s282, %s283
      %p294 = scmp.eq.s32.totalorder %s28, 0
      %p295 = por %p293, %p294
      %p296 = scmp.ne.s32.totalorder %s282, %s283
      %p297 = scmp.eq.s32.totalorder %s29, 3
      %p298 = por %p296, %p297
      %p300 = scmp.ne.s32.totalorder %s283, %s299
      %p301 = scmp.eq.s32.totalorder %s29, 0
      %p302 = por %p300, %p301
      %s303 = ssub.s32 %s31, %s38
      %p304 = scmp.eq.s32.totalorder %s303, 0
      %s306 = sadd.s32 %s305, 1
      %s307 = scalar_select %p304, %s305, %s306
      %p310 = pneg %p304
      %p311 = scmp.eq.s32.totalorder %s23, 3
      %p312 = por %p310, %p311
      %p313 = scmp.ne.s32.totalorder %s305, %s308
      %p314 = scmp.eq.s32.totalorder %s23, 0
      %p315 = por %p313, %p314
      %p316 = scmp.ne.s32.totalorder %s305, %s308
      %p317 = scmp.eq.s32.totalorder %s28, 3
      %p318 = por %p316, %p317
      %p319 = scmp.ne.s32.totalorder %s308, %s309
      %p320 = scmp.eq.s32.totalorder %s28, 0
      %p321 = por %p319, %p320
      %p322 = scmp.ne.s32.totalorder %s308, %s309
      %p323 = scmp.eq.s32.totalorder %s29, 3
      %p324 = por %p322, %p323
      %p326 = scmp.ne.s32.totalorder %s309, %s325
      %p327 = scmp.eq.s32.totalorder %s29, 0
      %p328 = por %p326, %p327
      %s329 = ssub.s32 %s31, %s38
      %p330 = scmp.eq.s32.totalorder %s329, 0
      %s332 = sadd.s32 %s331, 1
      %s333 = scalar_select %p330, %s331, %s332
      %p336 = pneg %p330
      %p337 = scmp.eq.s32.totalorder %s23, 3
      %p338 = por %p336, %p337
      %p339 = scmp.ne.s32.totalorder %s331, %s334
      %p340 = scmp.eq.s32.totalorder %s23, 0
      %p341 = por %p339, %p340
      %p342 = scmp.ne.s32.totalorder %s331, %s334
      %p343 = scmp.eq.s32.totalorder %s28, 3
      %p344 = por %p342, %p343
      %p345 = scmp.ne.s32.totalorder %s334, %s335
      %p346 = scmp.eq.s32.totalorder %s28, 0
      %p347 = por %p345, %p346
      %p348 = scmp.ne.s32.totalorder %s334, %s335
      %p349 = scmp.eq.s32.totalorder %s29, 3
      %p350 = por %p348, %p349
      %p352 = scmp.ne.s32.totalorder %s335, %s351
      %p353 = scmp.eq.s32.totalorder %s29, 0
      %p354 = por %p352, %p353
      %s356 = sadd.s32 %s355, 1
      %p359 = scmp.eq.s32.totalorder %s23, 3
      %p360 = scmp.ne.s32.totalorder %s355, %s357
      %p361 = scmp.eq.s32.totalorder %s23, 0
      %p362 = por %p360, %p361
      %p363 = scmp.ne.s32.totalorder %s355, %s357
      %p364 = scmp.eq.s32.totalorder %s28, 3
      %p365 = por %p363, %p364
      %p366 = scmp.ne.s32.totalorder %s357, %s358
      %p367 = scmp.eq.s32.totalorder %s28, 0
      %p368 = por %p366, %p367
      %p369 = scmp.ne.s32.totalorder %s357, %s358
      %p370 = scmp.eq.s32.totalorder %s29, 3
      %p371 = por %p369, %p370
      %p373 = scmp.ne.s32.totalorder %s358, %s372
      %p374 = scmp.eq.s32.totalorder %s29, 0
      %p375 = por %p373, %p374
      %s377 = sadd.s32 %s376, 1
      %p380 = scmp.eq.s32.totalorder %s23, 3
      %p381 = scmp.ne.s32.totalorder %s376, %s378
      %p382 = scmp.eq.s32.totalorder %s23, 0
      %p383 = por %p381, %p382
      %p384 = scmp.ne.s32.totalorder %s376, %s378
      %p385 = scmp.eq.s32.totalorder %s28, 3
      %p386 = por %p384, %p385
      %p387 = scmp.ne.s32.totalorder %s378, %s379
      %p388 = scmp.eq.s32.totalorder %s28, 0
      %p389 = por %p387, %p388
      %p390 = scmp.ne.s32.totalorder %s378, %s379
      %p391 = scmp.eq.s32.totalorder %s29, 3
      %p392 = por %p390, %p391
      %p394 = scmp.ne.s32.totalorder %s379, %s393
      %p395 = scmp.eq.s32.totalorder %s29, 0
      %p396 = por %p394, %p395
      %s397 = ssub.s32 %s30, %s42
      %p398 = scmp.eq.s32.totalorder %s397, 0
      %s400 = sadd.s32 %s399, 1
      %s401 = scalar_select %p398, %s399, %s400
      %p404 = pneg %p398
      %p405 = scmp.eq.s32.totalorder %s23, 3
      %p406 = por %p404, %p405
      %p407 = scmp.ne.s32.totalorder %s399, %s402
      %p408 = scmp.eq.s32.totalorder %s23, 0
      %p409 = por %p407, %p408
      %p410 = scmp.ne.s32.totalorder %s399, %s402
      %p411 = scmp.eq.s32.totalorder %s28, 3
      %p412 = por %p410, %p411
      %p413 = scmp.ne.s32.totalorder %s402, %s403
      %p414 = scmp.eq.s32.totalorder %s28, 0
      %p415 = por %p413, %p414
      %p416 = scmp.ne.s32.totalorder %s402, %s403
      %p417 = scmp.eq.s32.totalorder %s29, 3
      %p418 = por %p416, %p417
      %p420 = scmp.ne.s32.totalorder %s403, %s419
      %p421 = scmp.eq.s32.totalorder %s29, 0
      %p422 = por %p420, %p421
      %p423 = scmp.le.s32.totalorder 1, %s23
      %p424 = scmp.lt.s32.totalorder %s23, 5
      %p425 = pnand %p423, %p424
      %p426 = pneg %p425
      // Predicated region
      $region9: #{tpu_custom_call.1} parent=5 // pred_check
        _
      $region10: #{tpu_custom_call.1} parent=5 // pred_check_branch
        %428 = sbr.rel (%p425) target = $region12
      $region11: #{tpu_custom_call.1} parent=5 // pred_region
        %s429 = ssub.s32 %s23, 1
        // Predicated region
        $region13: #{tpu_custom_call.1} parent=11 // pred_check
          %p430 = pneg %p368
        $region14: #{tpu_custom_call.1} parent=11 // pred_check_branch
          %432 = sbr.rel (%p430) target = $region16
        $region15: #{tpu_custom_call.1} parent=11 // pred_region
          _
        $region16: #{tpu_custom_call.1} parent=11 // pred_fallthru
          _
        // Predicated region
        $region17: #{tpu_custom_call.1} parent=11 // pred_check
          %p433 = pneg %p389
        $region18: #{tpu_custom_call.1} parent=11 // pred_check_branch
          %435 = sbr.rel (%p433) target = $region20
        $region19: #{tpu_custom_call.1} parent=11 // pred_region
          _
        $region20: #{tpu_custom_call.1} parent=11 // pred_fallthru
          _
      $region12: #{tpu_custom_call.1} parent=5 // pred_fallthru
        _
      %p436 = scmp.lt.s32.totalorder %s23, 4
      // Predicated region
      $region21: #{tpu_custom_call.1} parent=5 // pred_check
        %p437 = pneg %p436
      $region22: #{tpu_custom_call.1} parent=5 // pred_check_branch
        %439 = sbr.rel (%p437) target = $region24
      $region23: #{tpu_custom_call.1} parent=5 // pred_region
        // Predicated region
        $region25: #{tpu_custom_call.1} parent=23 // pred_check
          %p440 = pneg %p55
        $region26: #{tpu_custom_call.1} parent=23 // pred_check_branch
          %442 = sbr.rel (%p440) target = $region28
        $region27: #{tpu_custom_call.1} parent=23 // pred_region
          %p443 = scmp.lt.s32.totalorder %s30, 1
          %s444 = scalar_select %p443, %s30, 1
          %s445 = smul.addr %s444, 8
          %s446 = scalar_lea.vmem %s0, %s445
        $region28: #{tpu_custom_call.1} parent=23 // pred_fallthru
          _
        // Predicated region
        $region29: #{tpu_custom_call.1} parent=23 // pred_check
          %p447 = pneg %p81
        $region30: #{tpu_custom_call.1} parent=23 // pred_check_branch
          %449 = sbr.rel (%p447) target = $region32
        $region31: #{tpu_custom_call.1} parent=23 // pred_region
          %p450 = scmp.lt.s32.totalorder %s31, 1
          %s451 = scalar_select %p450, %s31, 1
          %s452 = scalar_lea.vmem %s1, %s451
        $region32: #{tpu_custom_call.1} parent=23 // pred_fallthru
          _
        // Predicated region
        $region33: #{tpu_custom_call.1} parent=23 // pred_check
          %p453 = pneg %p107
        $region34: #{tpu_custom_call.1} parent=23 // pred_check_branch
          %455 = sbr.rel (%p453) target = $region36
        $region35: #{tpu_custom_call.1} parent=23 // pred_region
          %p456 = scmp.lt.s32.totalorder %s31, 1
          %s457 = scalar_select %p456, %s31, 1
          %s458 = scalar_lea.vmem %s2, %s457
        $region36: #{tpu_custom_call.1} parent=23 // pred_fallthru
          _
        // Predicated region
        $region37: #{tpu_custom_call.1} parent=23 // pred_check
          %p459 = pneg %p133
        $region38: #{tpu_custom_call.1} parent=23 // pred_check_branch
          %461 = sbr.rel (%p459) target = $region40
        $region39: #{tpu_custom_call.1} parent=23 // pred_region
          %p462 = scmp.lt.s32.totalorder %s31, 1
          %s463 = scalar_select %p462, %s31, 1
          %s464 = smul.addr %s463, 8
          %s465 = smul.addr %s464, 8
          %s466 = scalar_lea.vmem %s3, %s465
        $region40: #{tpu_custom_call.1} parent=23 // pred_fallthru
          _
        // Predicated region
        $region41: #{tpu_custom_call.1} parent=23 // pred_check
          %p467 = pneg %p159
        $region42: #{tpu_custom_call.1} parent=23 // pred_check_branch
          %469 = sbr.rel (%p467) target = $region44
        $region43: #{tpu_custom_call.1} parent=23 // pred_region
          %p470 = scmp.lt.s32.totalorder %s31, 1
          %s471 = scalar_select %p470, %s31, 1
          %s472 = smul.addr %s471, 8
          %s473 = smul.addr %s472, 8
          %s474 = scalar_lea.vmem %s4, %s473
        $region44: #{tpu_custom_call.1} parent=23 // pred_fallthru
          _
        // Predicated region
        $region45: #{tpu_custom_call.1} parent=23 // pred_check
          %p475 = pneg %p185
        $region46: #{tpu_custom_call.1} parent=23 // pred_check_branch
          %477 = sbr.rel (%p475) target = $region48
        $region47: #{tpu_custom_call.1} parent=23 // pred_region
          %p478 = scmp.lt.s32.totalorder %s31, 1
          %s479 = scalar_select %p478, %s31, 1
          %s480 = scalar_lea.vmem %s5, %s479
        $region48: #{tpu_custom_call.1} parent=23 // pred_fallthru
          _
        // Predicated region
        $region49: #{tpu_custom_call.1} parent=23 // pred_check
          %p481 = pneg %p211
        $region50: #{tpu_custom_call.1} parent=23 // pred_check_branch
          %483 = sbr.rel (%p481) target = $region52
        $region51: #{tpu_custom_call.1} parent=23 // pred_region
          %p484 = scmp.lt.s32.totalorder %s31, 1
          %s485 = scalar_select %p484, %s31, 1
          %s486 = scalar_lea.vmem %s6, %s485
        $region52: #{tpu_custom_call.1} parent=23 // pred_fallthru
          _
        // Predicated region
        $region53: #{tpu_custom_call.1} parent=23 // pred_check
          %p487 = pneg %p237
        $region54: #{tpu_custom_call.1} parent=23 // pred_check_branch
          %489 = sbr.rel (%p487) target = $region56
        $region55: #{tpu_custom_call.1} parent=23 // pred_region
          %p490 = scmp.lt.s32.totalorder %s31, 1
          %s491 = scalar_select %p490, %s31, 1
          %s492 = scalar_lea.vmem %s7, %s491
        $region56: #{tpu_custom_call.1} parent=23 // pred_fallthru
          _
        // Predicated region
        $region57: #{tpu_custom_call.1} parent=23 // pred_check
          %p493 = pneg %p263
        $region58: #{tpu_custom_call.1} parent=23 // pred_check_branch
          %495 = sbr.rel (%p493) target = $region60
        $region59: #{tpu_custom_call.1} parent=23 // pred_region
          %p496 = scmp.lt.s32.totalorder %s31, 1
          %s497 = scalar_select %p496, %s31, 1
          %s498 = smul.addr %s497, 4
          %s499 = smul.addr %s498, 8
          %s500 = scalar_lea.vmem %s8, %s499
        $region60: #{tpu_custom_call.1} parent=23 // pred_fallthru
          _
        // Predicated region
        $region61: #{tpu_custom_call.1} parent=23 // pred_check
          %p501 = pneg %p289
        $region62: #{tpu_custom_call.1} parent=23 // pred_check_branch
          %503 = sbr.rel (%p501) target = $region64
        $region63: #{tpu_custom_call.1} parent=23 // pred_region
          %p504 = scmp.lt.s32.totalorder %s31, 1
          %s505 = scalar_select %p504, %s31, 1
          %s506 = scalar_lea.vmem %s9, %s505
        $region64: #{tpu_custom_call.1} parent=23 // pred_fallthru
          _
        // Predicated region
        $region65: #{tpu_custom_call.1} parent=23 // pred_check
          %p507 = pneg %p315
        $region66: #{tpu_custom_call.1} parent=23 // pred_check_branch
          %509 = sbr.rel (%p507) target = $region68
        $region67: #{tpu_custom_call.1} parent=23 // pred_region
          %p510 = scmp.lt.s32.totalorder %s31, 1
          %s511 = scalar_select %p510, %s31, 1
          %s512 = smul.addr %s511, 8
          %s513 = smul.addr %s512, 8
          %s514 = scalar_lea.vmem %s10, %s513
        $region68: #{tpu_custom_call.1} parent=23 // pred_fallthru
          _
        // Predicated region
        $region69: #{tpu_custom_call.1} parent=23 // pred_check
          %p515 = pneg %p341
        $region70: #{tpu_custom_call.1} parent=23 // pred_check_branch
          %517 = sbr.rel (%p515) target = $region72
        $region71: #{tpu_custom_call.1} parent=23 // pred_region
          %p518 = scmp.lt.s32.totalorder %s31, 1
          %s519 = scalar_select %p518, %s31, 1
          %s520 = scalar_lea.vmem %s11, %s519
        $region72: #{tpu_custom_call.1} parent=23 // pred_fallthru
          _
      $region24: #{tpu_custom_call.1} parent=5 // pred_fallthru
        _
      %p521 = scmp.le.s32.totalorder 1, %s23
      %p522 = scmp.lt.s32.totalorder %s23, 5
      %p523 = pnand %p521, %p522
      %p524 = pneg %p523
      // Predicated region
      $region73: #{tpu_custom_call.1} parent=5 // pred_check
        _
      $region74: #{tpu_custom_call.1} parent=5 // pred_check_branch
        %526 = sbr.rel (%p523) target = $region76
      $region75: #{tpu_custom_call.1} parent=5 // pred_region
        %s527 = ssub.s32 %s23, 1
        %p528 = scmp.lt.s32.totalorder %s32, 1
        %s529 = scalar_select %p528, %s32, 1
        %s530 = smul.addr %s529, 8
        %s531 = scalar_lea.vmem %s0, %s530
        %p532 = pneg %p61
        %p533 = pneg %p58
        %p534 = scmp.lt.s32.totalorder %s33, 1
        %s535 = scalar_select %p534, %s33, 1
        %s536 = scalar_lea.vmem %s1, %s535
        %p537 = pneg %p87
        %p538 = pneg %p84
        %p539 = scmp.lt.s32.totalorder %s33, 1
        %s540 = scalar_select %p539, %s33, 1
        %s541 = scalar_lea.vmem %s2, %s540
        %p542 = pneg %p113
        %p543 = pneg %p110
        %p544 = scmp.lt.s32.totalorder %s33, 1
        %s545 = scalar_select %p544, %s33, 1
        %s546 = smul.addr %s545, 8
        %s547 = smul.addr %s546, 8
        %s548 = scalar_lea.vmem %s3, %s547
        %p549 = pneg %p139
        %p550 = pneg %p136
        %p551 = scmp.lt.s32.totalorder %s33, 1
        %s552 = scalar_select %p551, %s33, 1
        %s553 = smul.addr %s552, 8
        %s554 = smul.addr %s553, 8
        %s555 = scalar_lea.vmem %s4, %s554
        %p556 = pneg %p165
        %p557 = pneg %p162
        %p558 = scmp.lt.s32.totalorder %s33, 1
        %s559 = scalar_select %p558, %s33, 1
        %s560 = scalar_lea.vmem %s5, %s559
        %p561 = pneg %p191
        %p562 = pneg %p188
        %p563 = scmp.lt.s32.totalorder %s33, 1
        %s564 = scalar_select %p563, %s33, 1
        %s565 = scalar_lea.vmem %s6, %s564
        %p566 = pneg %p217
        %p567 = pneg %p214
        %p568 = scmp.lt.s32.totalorder %s33, 1
        %s569 = scalar_select %p568, %s33, 1
        %s570 = scalar_lea.vmem %s7, %s569
        %p571 = pneg %p243
        %p572 = pneg %p240
        %p573 = scmp.lt.s32.totalorder %s33, 1
        %s574 = scalar_select %p573, %s33, 1
        %s575 = smul.addr %s574, 4
        %s576 = smul.addr %s575, 8
        %s577 = scalar_lea.vmem %s8, %s576
        %p578 = pneg %p269
        %p579 = pneg %p266
        %p580 = scmp.lt.s32.totalorder %s33, 1
        %s581 = scalar_select %p580, %s33, 1
        %s582 = scalar_lea.vmem %s9, %s581
        %p583 = pneg %p295
        %p584 = pneg %p292
        %p585 = scmp.lt.s32.totalorder %s33, 1
        %s586 = scalar_select %p585, %s33, 1
        %s587 = smul.addr %s586, 8
        %s588 = smul.addr %s587, 8
        %s589 = scalar_lea.vmem %s10, %s588
        %p590 = pneg %p321
        %p591 = pneg %p318
        %p592 = scmp.lt.s32.totalorder %s33, 1
        %s593 = scalar_select %p592, %s33, 1
        %s594 = scalar_lea.vmem %s11, %s593
        %p595 = pneg %p347
        %p596 = pneg %p344
        %p597 = pneg %p368
        %p598 = pneg %p365
        %p599 = pneg %p389
        %p600 = pneg %p386
        %p601 = pneg %p415
        %p602 = pneg %p412
        %s603 = sand.u32 %s402, 1
        %s604 = scalar_lea.sflag [#allocation5], %s603
        %s605 = sand.u32 %s402, 1
        %s606 = smul.addr %s605, 8
        %s607 = scalar_lea.vmem [#allocation4], %s606
        %p608 = scmp.lt.s32.totalorder %s32, 1
        %s609 = scalar_select %p608, %s32, 1
        %s610 = smul.addr %s609, 8
        %s611 = scalar_lea.vmem %s0, %s610
        %p612 = scmp.lt.s32.totalorder %s33, 1
        %s613 = scalar_select %p612, %s33, 1
        %s614 = scalar_lea.vmem %s1, %s613
        %p615 = scmp.lt.s32.totalorder %s33, 1
        %s616 = scalar_select %p615, %s33, 1
        %s617 = scalar_lea.vmem %s2, %s616
        %p618 = scmp.lt.s32.totalorder %s33, 1
        %s619 = scalar_select %p618, %s33, 1
        %s620 = smul.addr %s619, 8
        %s621 = smul.addr %s620, 8
        %s622 = scalar_lea.vmem %s3, %s621
        %p623 = scmp.lt.s32.totalorder %s33, 1
        %s624 = scalar_select %p623, %s33, 1
        %s625 = smul.addr %s624, 8
        %s626 = smul.addr %s625, 8
        %s627 = scalar_lea.vmem %s4, %s626
        %p628 = scmp.lt.s32.totalorder %s33, 1
        %s629 = scalar_select %p628, %s33, 1
        %s630 = scalar_lea.vmem %s5, %s629
        %p631 = scmp.lt.s32.totalorder %s33, 1
        %s632 = scalar_select %p631, %s33, 1
        %s633 = scalar_lea.vmem %s6, %s632
        %p634 = scmp.lt.s32.totalorder %s33, 1
        %s635 = scalar_select %p634, %s33, 1
        %s636 = scalar_lea.vmem %s7, %s635
        %p637 = scmp.lt.s32.totalorder %s33, 1
        %s638 = scalar_select %p637, %s33, 1
        %s639 = smul.addr %s638, 4
        %s640 = smul.addr %s639, 8
        %s641 = scalar_lea.vmem %s8, %s640
        %p642 = scmp.lt.s32.totalorder %s33, 1
        %s643 = scalar_select %p642, %s33, 1
        %s644 = scalar_lea.vmem %s9, %s643
        %p645 = scmp.lt.s32.totalorder %s33, 1
        %s646 = scalar_select %p645, %s33, 1
        %s647 = smul.addr %s646, 8
        %s648 = smul.addr %s647, 8
        %s649 = scalar_lea.vmem %s10, %s648
        %p650 = scmp.lt.s32.totalorder %s33, 1
        %s651 = scalar_select %p650, %s33, 1
        %s652 = scalar_lea.vmem %s11, %s651
        %p653 = scmp.eq.s32.totalorder %s33, 0
        // Predicated region
        $region77: #{tpu_custom_call.1} parent=75 // pred_check
          %p654 = pneg %p653
        $region78: #{tpu_custom_call.1} parent=75 // pred_check_branch
          %656 = sbr.rel (%p654) target = $region80
        $region79: #{tpu_custom_call.1} parent=75 // pred_region
          %v657 = vld [vmem:[%s611] sm:$0xff]
          %vm658 = vcmask 261120
          %659 = vst.msk [vmem:[#allocation2] sm:$0xff] %vm658, %v657
        $region80: #{tpu_custom_call.1} parent=75 // pred_fallthru
          _
        %v660 = vld [vmem:[#allocation2] sm:$0xff]
        %v661 = vld [vmem:[%s614] sm:$0x1]
        %v662 = vld [vmem:[%s617] sm:$0x1]
        %vm663 = vcmask 261120
        %v664 = vsel %vm663, %v660, 0.0
        %665 = vadd.xlane.f32.xlu0 %v664
        %v666 = vpop.xlane.xlu0 %665
        %v667 = vrcp.pop 32.0
        %v668 = vmul.f32 %v666, %v667
        %v669 = vsub.f32 %v660, %v668
        %v670 = vmul.f32 %v669, %v669
        %v671 = vsel %vm663, %v670, 0.0
        %672 = vadd.xlane.f32.xlu0 %v671
        %v673 = vpop.xlane.xlu0 %672
        %v674 = vmul.f32 %v673, %v667
        %v675 = vadd.f32 %v674, 1e-05
        %v676 = vrsqrt.pop %v675
        %v677 = vmul.f32 %v669, %v676
        %v679 = vlaneseq
        %v680 = vshrl.u32 %v679, 7
        %v681 = vsub.s32 0, %v680
        %v682 = vrot.slane %v661, %v681
        %v684 = vmul.f32 %v677, %v682
        %v686 = vlaneseq
        %v687 = vshrl.u32 %v686, 7
        %v688 = vsub.s32 0, %v687
        %v689 = vrot.slane %v662, %v688
        %v691 = vadd.f32 %v684, %v689
        %v692 = vld [vmem:[%s622] sm:$0xff]
        %v693 = vld [vmem:[%s622 + $0x8] sm:$0xff]
        %v694 = vld [vmem:[%s622 + $0x10] sm:$0xff]
        %v695 = vld [vmem:[%s622 + $0x18] sm:$0xff]
        %v696 = vld [vmem:[%s622 + $0x20] sm:$0xff]
        %v697 = vld [vmem:[%s622 + $0x28] sm:$0xff]
        %v698 = vld [vmem:[%s622 + $0x30] sm:$0xff]
        %v699 = vld [vmem:[%s622 + $0x38] sm:$0xff]
        %v701 = vsel %vm663, %v691, 0
        %703 = vmatprep.subr.mxu0 %v693
        %704 = vmatpush1.msra.mxu0 %v692
        %705 = vmatprep.subr.mxu0 %v695
        %706 = vmatpush1.msra.mxu0 %v694
        %707 = vmatprep.subr.mxu0 %v697
        %708 = vmatpush1.msra.mxu0 %v696
        %709 = vmatprep.subr.mxu0 %v699
        %710 = vmatpush1.msra.mxu0 %v698
        %711 = vmatprep.subr.mxu0 0.0
        %712 = vmatpush1.msra.mxu0 0.0
        %713 = vmatprep.subr.mxu0 0.0
        %714 = vmatpush1.msra.mxu0 0.0
        %715 = vmatprep.subr.mxu0 0.0
        %716 = vmatpush1.msra.mxu0 0.0
        %717 = vmatprep.subr.mxu0 0.0
        %718 = vmatpush1.msra.mxu0 0.0
        %719 = vmatprep.subr.mxu0 0.0
        %720 = vmatpush1.msra.mxu0 0.0
        %721 = vmatprep.subr.mxu0 0.0
        %722 = vmatpush1.msra.mxu0 0.0
        %723 = vmatprep.subr.mxu0 0.0
        %724 = vmatpush1.msra.mxu0 0.0
        %725 = vmatprep.subr.mxu0 0.0
        %726 = vmatpush1.msra.mxu0 0.0
        %727 = vmatprep.subr.mxu0 0.0
        %728 = vmatpush1.msra.mxu0 0.0
        %729 = vmatprep.subr.mxu0 0.0
        %730 = vmatpush1.msra.mxu0 0.0
        %731 = vmatprep.subr.mxu0 0.0
        %732 = vmatpush1.msra.mxu0 0.0
        %733 = vmatprep.subr.mxu0 0.0
        %734 = vmatpush1.msra.mxu0 0.0
        %735 = vmatprep.subr.mxu0 0.0
        %736 = vmatpush1.msra.mxu0 0.0
        %737 = vmatprep.subr.mxu0 0.0
        %738 = vmatpush1.msra.mxu0 0.0
        %739 = vmatprep.subr.mxu0 0.0
        %740 = vmatpush1.msra.mxu0 0.0
        %741 = vmatprep.subr.mxu0 0.0
        %742 = vmatpush1.msra.mxu0 0.0
        %743 = vmatprep.subr.mxu0 0.0
        %744 = vmatpush1.msra.mxu0 0.0
        %745 = vmatprep.subr.mxu0 0.0
        %746 = vmatpush1.msra.mxu0 0.0
        %747 = vmatprep.subr.mxu0 0.0
        %748 = vmatpush1.msra.mxu0 0.0
        %749 = vmatprep.subr.mxu0 0.0
        %750 = vmatpush1.msra.mxu0 0.0
        %751 = vmatprep.subr.mxu0 0.0
        %752 = vmatpush1.msra.mxu0 0.0
        %753 = vmatprep.subr.mxu0 0.0
        %754 = vmatpush1.msra.mxu0 0.0
        %755 = vmatprep.subr.mxu0 0.0
        %756 = vmatpush1.msra.mxu0 0.0
        %757 = vmatprep.subr.mxu0 0.0
        %758 = vmatpush1.msra.mxu0 0.0
        %759 = vmatprep.subr.mxu0 0.0
        %760 = vmatpush1.msra.mxu0 0.0
        %761 = vmatprep.subr.mxu0 0.0
        %762 = vmatpush1.msra.mxu0 0.0
        %763 = vmatprep.subr.mxu0 0.0
        %764 = vmatpush1.msra.mxu0 0.0
        %765 = vmatprep.subr.mxu0 0.0
        %766 = vmatpush1.msra.mxu0 0.0
        %767 = vmatprep.mubr.f32.mxu0 0.0
        %768 = vmatmul.mubr.f32.gmra.mrb[0].mxu0 %v701
        %v769 = vpop.f32.mrb[0].mxu0
        %v770 = vadd.f32 0.0, %v769
        %v771 = vpop.f32.mrb[0].mxu0
        %v772 = vadd.f32 0.0, %v771
        %773 = vdwg.mxu0
        %775 = vrot.lane.b32.xlu0 %v770, 64
        %v776 = vpop.permute.xlu0 %775
        %vm777 = vcmask 130048
        %v778 = vsel %vm777, %v770, 0
        %v780 = vsel %vm777, %v776, 0
        %782 = vmatprep.subr.mxu0 0.0
        %783 = vmatpush1.xpose.msra.mxu0 %v780
        %784 = vmatprep.subr.mxu0 0.0
        %785 = vmatpush1.xpose.msra.mxu0 0.0
        %786 = vmatprep.subr.mxu0 0.0
        %787 = vmatpush1.xpose.msra.mxu0 0.0
        %788 = vmatprep.subr.mxu0 0.0
        %789 = vmatpush1.xpose.msra.mxu0 0.0
        %790 = vmatprep.subr.mxu0 0.0
        %791 = vmatpush1.xpose.msra.mxu0 0.0
        %792 = vmatprep.subr.mxu0 0.0
        %793 = vmatpush1.xpose.msra.mxu0 0.0
        %794 = vmatprep.subr.mxu0 0.0
        %795 = vmatpush1.xpose.msra.mxu0 0.0
        %796 = vmatprep.subr.mxu0 0.0
        %797 = vmatpush1.xpose.msra.mxu0 0.0
        %798 = vmatprep.subr.mxu0 0.0
        %799 = vmatpush1.xpose.msra.mxu0 0.0
        %800 = vmatprep.subr.mxu0 0.0
        %801 = vmatpush1.xpose.msra.mxu0 0.0
        %802 = vmatprep.subr.mxu0 0.0
        %803 = vmatpush1.xpose.msra.mxu0 0.0
        %804 = vmatprep.subr.mxu0 0.0
        %805 = vmatpush1.xpose.msra.mxu0 0.0
        %806 = vmatprep.subr.mxu0 0.0
        %807 = vmatpush1.xpose.msra.mxu0 0.0
        %808 = vmatprep.subr.mxu0 0.0
        %809 = vmatpush1.xpose.msra.mxu0 0.0
        %810 = vmatprep.subr.mxu0 0.0
        %811 = vmatpush1.xpose.msra.mxu0 0.0
        %812 = vmatprep.subr.mxu0 0.0
        %813 = vmatpush1.xpose.msra.mxu0 0.0
        %814 = vmatprep.subr.mxu0 0.0
        %815 = vmatpush1.xpose.msra.mxu0 0.0
        %816 = vmatprep.subr.mxu0 0.0
        %817 = vmatpush1.xpose.msra.mxu0 0.0
        %818 = vmatprep.subr.mxu0 0.0
        %819 = vmatpush1.xpose.msra.mxu0 0.0
        %820 = vmatprep.subr.mxu0 0.0
        %821 = vmatpush1.xpose.msra.mxu0 0.0
        %822 = vmatprep.subr.mxu0 0.0
        %823 = vmatpush1.xpose.msra.mxu0 0.0
        %824 = vmatprep.subr.mxu0 0.0
        %825 = vmatpush1.xpose.msra.mxu0 0.0
        %826 = vmatprep.subr.mxu0 0.0
        %827 = vmatpush1.xpose.msra.mxu0 0.0
        %828 = vmatprep.subr.mxu0 0.0
        %829 = vmatpush1.xpose.msra.mxu0 0.0
        %830 = vmatprep.subr.mxu0 0.0
        %831 = vmatpush1.xpose.msra.mxu0 0.0
        %832 = vmatprep.subr.mxu0 0.0
        %833 = vmatpush1.xpose.msra.mxu0 0.0
        %834 = vmatprep.subr.mxu0 0.0
        %835 = vmatpush1.xpose.msra.mxu0 0.0
        %836 = vmatprep.subr.mxu0 0.0
        %837 = vmatpush1.xpose.msra.mxu0 0.0
        %838 = vmatprep.subr.mxu0 0.0
        %839 = vmatpush1.xpose.msra.mxu0 0.0
        %840 = vmatprep.subr.mxu0 0.0
        %841 = vmatpush1.xpose.msra.mxu0 0.0
        %842 = vmatprep.subr.mxu0 0.0
        %843 = vmatpush1.xpose.msra.mxu0 0.0
        %844 = vmatprep.subr.mxu0 0.0
        %845 = vmatpush1.xpose.msra.mxu0 0.0
        %846 = vmatprep.mubr.f32.mxu0 0.0
        %847 = vmatmul.mubr.f32.gmra.mrb[0].mxu0 %v778
        %v848 = vpop.f32.mrb[0].mxu0
        %v849 = vadd.f32 0.0, %v848
        %v850 = vpop.f32.mrb[0].mxu0
        %851 = vdwg.mxu0
        %vm852 = vcmask 64512
        %v853 = vsel %vm852, %v849, -inf
        %854 = vmax.xlane.f32.xlu0 %v853
        %v855 = vpop.xlane.xlu0 %854
        %v856 = vsub.f32 %v849, %v855
        %v857 = vmul.f32 %v856, 1.442695
        %v858 = vpow.pop %v857
        %v859 = vsel %vm852, %v858, 0.0
        %860 = vadd.xlane.f32.xlu0 %v859
        %v861 = vpop.xlane.xlu0 %860
        %v862 = vrcp.pop %v861
        %v863 = vmul.f32 %v858, %v862
        %v865 = vsel %vm852, %v863, 0
        %867 = vmatprep.subr.mxu0 0.0
        %868 = vmatpush1.msra.mxu0 %v772
        %869 = vmatprep.subr.mxu0 0.0
        %870 = vmatpush1.msra.mxu0 0.0
        %871 = vmatprep.subr.mxu0 0.0
        %872 = vmatpush1.msra.mxu0 0.0
        %873 = vmatprep.subr.mxu0 0.0
        %874 = vmatpush1.msra.mxu0 0.0
        %875 = vmatprep.subr.mxu0 0.0
        %876 = vmatpush1.msra.mxu0 0.0
        %877 = vmatprep.subr.mxu0 0.0
        %878 = vmatpush1.msra.mxu0 0.0
        %879 = vmatprep.subr.mxu0 0.0
        %880 = vmatpush1.msra.mxu0 0.0
        %881 = vmatprep.subr.mxu0 0.0
        %882 = vmatpush1.msra.mxu0 0.0
        %883 = vmatprep.subr.mxu0 0.0
        %884 = vmatpush1.msra.mxu0 0.0
        %885 = vmatprep.subr.mxu0 0.0
        %886 = vmatpush1.msra.mxu0 0.0
        %887 = vmatprep.subr.mxu0 0.0
        %888 = vmatpush1.msra.mxu0 0.0
        %889 = vmatprep.subr.mxu0 0.0
        %890 = vmatpush1.msra.mxu0 0.0
        %891 = vmatprep.subr.mxu0 0.0
        %892 = vmatpush1.msra.mxu0 0.0
        %893 = vmatprep.subr.mxu0 0.0
        %894 = vmatpush1.msra.mxu0 0.0
        %895 = vmatprep.subr.mxu0 0.0
        %896 = vmatpush1.msra.mxu0 0.0
        %897 = vmatprep.subr.mxu0 0.0
        %898 = vmatpush1.msra.mxu0 0.0
        %899 = vmatprep.subr.mxu0 0.0
        %900 = vmatpush1.msra.mxu0 0.0
        %901 = vmatprep.subr.mxu0 0.0
        %902 = vmatpush1.msra.mxu0 0.0
        %903 = vmatprep.subr.mxu0 0.0
        %904 = vmatpush1.msra.mxu0 0.0
        %905 = vmatprep.subr.mxu0 0.0
        %906 = vmatpush1.msra.mxu0 0.0
        %907 = vmatprep.subr.mxu0 0.0
        %908 = vmatpush1.msra.mxu0 0.0
        %909 = vmatprep.subr.mxu0 0.0
        %910 = vmatpush1.msra.mxu0 0.0
        %911 = vmatprep.subr.mxu0 0.0
        %912 = vmatpush1.msra.mxu0 0.0
        %913 = vmatprep.subr.mxu0 0.0
        %914 = vmatpush1.msra.mxu0 0.0
        %915 = vmatprep.subr.mxu0 0.0
        %916 = vmatpush1.msra.mxu0 0.0
        %917 = vmatprep.subr.mxu0 0.0
        %918 = vmatpush1.msra.mxu0 0.0
        %919 = vmatprep.subr.mxu0 0.0
        %920 = vmatpush1.msra.mxu0 0.0
        %921 = vmatprep.subr.mxu0 0.0
        %922 = vmatpush1.msra.mxu0 0.0
        %923 = vmatprep.subr.mxu0 0.0
        %924 = vmatpush1.msra.mxu0 0.0
        %925 = vmatprep.subr.mxu0 0.0
        %926 = vmatpush1.msra.mxu0 0.0
        %927 = vmatprep.subr.mxu0 0.0
        %928 = vmatpush1.msra.mxu0 0.0
        %929 = vmatprep.subr.mxu0 0.0
        %930 = vmatpush1.msra.mxu0 0.0
        %931 = vmatprep.mubr.f32.mxu0 0.0
        %932 = vmatmul.mubr.f32.gmra.mrb[0].mxu0 %v865
        %v933 = vpop.f32.mrb[0].mxu0
        %v934 = vadd.f32 0.0, %v933
        %v935 = vpop.f32.mrb[0].mxu0
        %936 = vdwg.mxu0
        %937 = vst.msk [vmem:[#allocation3] sm:$0xff] %vm777, %v934
        %938 = vrot.lane.b32.xlu0 %v770, 112
        %v939 = vpop.permute.xlu0 %938
        %940 = vrot.lane.b32.xlu0 %v770, 48
        %v941 = vpop.permute.xlu0 %940
        %v942 = vsel %vm777, %v939, 0
        %v944 = vsel %vm777, %v941, 0
        %946 = vmatprep.subr.mxu0 0.0
        %947 = vmatpush1.xpose.msra.mxu0 %v944
        %948 = vmatprep.subr.mxu0 0.0
        %949 = vmatpush1.xpose.msra.mxu0 0.0
        %950 = vmatprep.subr.mxu0 0.0
        %951 = vmatpush1.xpose.msra.mxu0 0.0
        %952 = vmatprep.subr.mxu0 0.0
        %953 = vmatpush1.xpose.msra.mxu0 0.0
        %954 = vmatprep.subr.mxu0 0.0
        %955 = vmatpush1.xpose.msra.mxu0 0.0
        %956 = vmatprep.subr.mxu0 0.0
        %957 = vmatpush1.xpose.msra.mxu0 0.0
        %958 = vmatprep.subr.mxu0 0.0
        %959 = vmatpush1.xpose.msra.mxu0 0.0
        %960 = vmatprep.subr.mxu0 0.0
        %961 = vmatpush1.xpose.msra.mxu0 0.0
        %962 = vmatprep.subr.mxu0 0.0
        %963 = vmatpush1.xpose.msra.mxu0 0.0
        %964 = vmatprep.subr.mxu0 0.0
        %965 = vmatpush1.xpose.msra.mxu0 0.0
        %966 = vmatprep.subr.mxu0 0.0
        %967 = vmatpush1.xpose.msra.mxu0 0.0
        %968 = vmatprep.subr.mxu0 0.0
        %969 = vmatpush1.xpose.msra.mxu0 0.0
        %970 = vmatprep.subr.mxu0 0.0
        %971 = vmatpush1.xpose.msra.mxu0 0.0
        %972 = vmatprep.subr.mxu0 0.0
        %973 = vmatpush1.xpose.msra.mxu0 0.0
        %974 = vmatprep.subr.mxu0 0.0
        %975 = vmatpush1.xpose.msra.mxu0 0.0
        %976 = vmatprep.subr.mxu0 0.0
        %977 = vmatpush1.xpose.msra.mxu0 0.0
        %978 = vmatprep.subr.mxu0 0.0
        %979 = vmatpush1.xpose.msra.mxu0 0.0
        %980 = vmatprep.subr.mxu0 0.0
        %981 = vmatpush1.xpose.msra.mxu0 0.0
        %982 = vmatprep.subr.mxu0 0.0
        %983 = vmatpush1.xpose.msra.mxu0 0.0
        %984 = vmatprep.subr.mxu0 0.0
        %985 = vmatpush1.xpose.msra.mxu0 0.0
        %986 = vmatprep.subr.mxu0 0.0
        %987 = vmatpush1.xpose.msra.mxu0 0.0
        %988 = vmatprep.subr.mxu0 0.0
        %989 = vmatpush1.xpose.msra.mxu0 0.0
        %990 = vmatprep.subr.mxu0 0.0
        %991 = vmatpush1.xpose.msra.mxu0 0.0
        %992 = vmatprep.subr.mxu0 0.0
        %993 = vmatpush1.xpose.msra.mxu0 0.0
        %994 = vmatprep.subr.mxu0 0.0
        %995 = vmatpush1.xpose.msra.mxu0 0.0
        %996 = vmatprep.subr.mxu0 0.0
        %997 = vmatpush1.xpose.msra.mxu0 0.0
        %998 = vmatprep.subr.mxu0 0.0
        %999 = vmatpush1.xpose.msra.mxu0 0.0
        %1000 = vmatprep.subr.mxu0 0.0
        %1001 = vmatpush1.xpose.msra.mxu0 0.0
        %1002 = vmatprep.subr.mxu0 0.0
        %1003 = vmatpush1.xpose.msra.mxu0 0.0
        %1004 = vmatprep.subr.mxu0 0.0
        %1005 = vmatpush1.xpose.msra.mxu0 0.0
        %1006 = vmatprep.subr.mxu0 0.0
        %1007 = vmatpush1.xpose.msra.mxu0 0.0
        %1008 = vmatprep.subr.mxu0 0.0
        %1009 = vmatpush1.xpose.msra.mxu0 0.0
        %1010 = vmatprep.mubr.f32.mxu0 0.0
        %1011 = vmatmul.mubr.f32.gmra.mrb[0].mxu0 %v942
        %v1012 = vpop.f32.mrb[0].mxu0
        %v1013 = vadd.f32 0.0, %v1012
        %v1014 = vpop.f32.mrb[0].mxu0
        %1015 = vdwg.mxu0
        %v1016 = vsel %vm852, %v1013, -inf
        %1017 = vmax.xlane.f32.xlu0 %v1016
        %v1018 = vpop.xlane.xlu0 %1017
        %v1019 = vsub.f32 %v1013, %v1018
        %v1020 = vmul.f32 %v1019, 1.442695
        %v1021 = vpow.pop %v1020
        %v1022 = vsel %vm852, %v1021, 0.0
        %1023 = vadd.xlane.f32.xlu0 %v1022
        %v1024 = vpop.xlane.xlu0 %1023
        %v1025 = vrcp.pop %v1024
        %v1026 = vmul.f32 %v1021, %v1025
        %1028 = vrot.lane.b32.xlu0 %v772, 112
        %v1029 = vpop.permute.xlu0 %1028
        %v1032 = vsel %vm852, %v1026, 0
        %1034 = vmatprep.subr.mxu0 0.0
        %1035 = vmatpush1.msra.mxu0 %v1029
        %1036 = vmatprep.subr.mxu0 0.0
        %1037 = vmatpush1.msra.mxu0 0.0
        %1038 = vmatprep.subr.mxu0 0.0
        %1039 = vmatpush1.msra.mxu0 0.0
        %1040 = vmatprep.subr.mxu0 0.0
        %1041 = vmatpush1.msra.mxu0 0.0
        %1042 = vmatprep.subr.mxu0 0.0
        %1043 = vmatpush1.msra.mxu0 0.0
        %1044 = vmatprep.subr.mxu0 0.0
        %1045 = vmatpush1.msra.mxu0 0.0
        %1046 = vmatprep.subr.mxu0 0.0
        %1047 = vmatpush1.msra.mxu0 0.0
        %1048 = vmatprep.subr.mxu0 0.0
        %1049 = vmatpush1.msra.mxu0 0.0
        %1050 = vmatprep.subr.mxu0 0.0
        %1051 = vmatpush1.msra.mxu0 0.0
        %1052 = vmatprep.subr.mxu0 0.0
        %1053 = vmatpush1.msra.mxu0 0.0
        %1054 = vmatprep.subr.mxu0 0.0
        %1055 = vmatpush1.msra.mxu0 0.0
        %1056 = vmatprep.subr.mxu0 0.0
        %1057 = vmatpush1.msra.mxu0 0.0
        %1058 = vmatprep.subr.mxu0 0.0
        %1059 = vmatpush1.msra.mxu0 0.0
        %1060 = vmatprep.subr.mxu0 0.0
        %1061 = vmatpush1.msra.mxu0 0.0
        %1062 = vmatprep.subr.mxu0 0.0
        %1063 = vmatpush1.msra.mxu0 0.0
        %1064 = vmatprep.subr.mxu0 0.0
        %1065 = vmatpush1.msra.mxu0 0.0
        %1066 = vmatprep.subr.mxu0 0.0
        %1067 = vmatpush1.msra.mxu0 0.0
        %1068 = vmatprep.subr.mxu0 0.0
        %1069 = vmatpush1.msra.mxu0 0.0
        %1070 = vmatprep.subr.mxu0 0.0
        %1071 = vmatpush1.msra.mxu0 0.0
        %1072 = vmatprep.subr.mxu0 0.0
        %1073 = vmatpush1.msra.mxu0 0.0
        %1074 = vmatprep.subr.mxu0 0.0
        %1075 = vmatpush1.msra.mxu0 0.0
        %1076 = vmatprep.subr.mxu0 0.0
        %1077 = vmatpush1.msra.mxu0 0.0
        %1078 = vmatprep.subr.mxu0 0.0
        %1079 = vmatpush1.msra.mxu0 0.0
        %1080 = vmatprep.subr.mxu0 0.0
        %1081 = vmatpush1.msra.mxu0 0.0
        %1082 = vmatprep.subr.mxu0 0.0
        %1083 = vmatpush1.msra.mxu0 0.0
        %1084 = vmatprep.subr.mxu0 0.0
        %1085 = vmatpush1.msra.mxu0 0.0
        %1086 = vmatprep.subr.mxu0 0.0
        %1087 = vmatpush1.msra.mxu0 0.0
        %1088 = vmatprep.subr.mxu0 0.0
        %1089 = vmatpush1.msra.mxu0 0.0
        %1090 = vmatprep.subr.mxu0 0.0
        %1091 = vmatpush1.msra.mxu0 0.0
        %1092 = vmatprep.subr.mxu0 0.0
        %1093 = vmatpush1.msra.mxu0 0.0
        %1094 = vmatprep.subr.mxu0 0.0
        %1095 = vmatpush1.msra.mxu0 0.0
        %1096 = vmatprep.subr.mxu0 0.0
        %1097 = vmatpush1.msra.mxu0 0.0
        %1098 = vmatprep.mubr.f32.mxu0 0.0
        %1099 = vmatmul.mubr.f32.gmra.mrb[0].mxu0 %v1032
        %v1100 = vpop.f32.mrb[0].mxu0
        %v1101 = vadd.f32 0.0, %v1100
        %v1102 = vpop.f32.mrb[0].mxu0
        %1103 = vdwg.mxu0
        %1105 = vrot.lane.b32.xlu0 %v1101, 16
        %v1106 = vpop.permute.xlu0 %1105
        %vm1108 = vcmask 261248
        %1109 = vst.msk [vmem:[#allocation3] sm:$0xff] %vm1108, %v1106
        %1110 = vrot.lane.b32.xlu0 %v770, 96
        %v1111 = vpop.permute.xlu0 %1110
        %1112 = vrot.lane.b32.xlu0 %v770, 32
        %v1113 = vpop.permute.xlu0 %1112
        %v1114 = vsel %vm777, %v1111, 0
        %v1116 = vsel %vm777, %v1113, 0
        %1118 = vmatprep.subr.mxu0 0.0
        %1119 = vmatpush1.xpose.msra.mxu0 %v1116
        %1120 = vmatprep.subr.mxu0 0.0
        %1121 = vmatpush1.xpose.msra.mxu0 0.0
        %1122 = vmatprep.subr.mxu0 0.0
        %1123 = vmatpush1.xpose.msra.mxu0 0.0
        %1124 = vmatprep.subr.mxu0 0.0
        %1125 = vmatpush1.xpose.msra.mxu0 0.0
        %1126 = vmatprep.subr.mxu0 0.0
        %1127 = vmatpush1.xpose.msra.mxu0 0.0
        %1128 = vmatprep.subr.mxu0 0.0
        %1129 = vmatpush1.xpose.msra.mxu0 0.0
        %1130 = vmatprep.subr.mxu0 0.0
        %1131 = vmatpush1.xpose.msra.mxu0 0.0
        %1132 = vmatprep.subr.mxu0 0.0
        %1133 = vmatpush1.xpose.msra.mxu0 0.0
        %1134 = vmatprep.subr.mxu0 0.0
        %1135 = vmatpush1.xpose.msra.mxu0 0.0
        %1136 = vmatprep.subr.mxu0 0.0
        %1137 = vmatpush1.xpose.msra.mxu0 0.0
        %1138 = vmatprep.subr.mxu0 0.0
        %1139 = vmatpush1.xpose.msra.mxu0 0.0
        %1140 = vmatprep.subr.mxu0 0.0
        %1141 = vmatpush1.xpose.msra.mxu0 0.0
        %1142 = vmatprep.subr.mxu0 0.0
        %1143 = vmatpush1.xpose.msra.mxu0 0.0
        %1144 = vmatprep.subr.mxu0 0.0
        %1145 = vmatpush1.xpose.msra.mxu0 0.0
        %1146 = vmatprep.subr.mxu0 0.0
        %1147 = vmatpush1.xpose.msra.mxu0 0.0
        %1148 = vmatprep.subr.mxu0 0.0
        %1149 = vmatpush1.xpose.msra.mxu0 0.0
        %1150 = vmatprep.subr.mxu0 0.0
        %1151 = vmatpush1.xpose.msra.mxu0 0.0
        %1152 = vmatprep.subr.mxu0 0.0
        %1153 = vmatpush1.xpose.msra.mxu0 0.0
        %1154 = vmatprep.subr.mxu0 0.0
        %1155 = vmatpush1.xpose.msra.mxu0 0.0
        %1156 = vmatprep.subr.mxu0 0.0
        %1157 = vmatpush1.xpose.msra.mxu0 0.0
        %1158 = vmatprep.subr.mxu0 0.0
        %1159 = vmatpush1.xpose.msra.mxu0 0.0
        %1160 = vmatprep.subr.mxu0 0.0
        %1161 = vmatpush1.xpose.msra.mxu0 0.0
        %1162 = vmatprep.subr.mxu0 0.0
        %1163 = vmatpush1.xpose.msra.mxu0 0.0
        %1164 = vmatprep.subr.mxu0 0.0
        %1165 = vmatpush1.xpose.msra.mxu0 0.0
        %1166 = vmatprep.subr.mxu0 0.0
        %1167 = vmatpush1.xpose.msra.mxu0 0.0
        %1168 = vmatprep.subr.mxu0 0.0
        %1169 = vmatpush1.xpose.msra.mxu0 0.0
        %1170 = vmatprep.subr.mxu0 0.0
        %1171 = vmatpush1.xpose.msra.mxu0 0.0
        %1172 = vmatprep.subr.mxu0 0.0
        %1173 = vmatpush1.xpose.msra.mxu0 0.0
        %1174 = vmatprep.subr.mxu0 0.0
        %1175 = vmatpush1.xpose.msra.mxu0 0.0
        %1176 = vmatprep.subr.mxu0 0.0
        %1177 = vmatpush1.xpose.msra.mxu0 0.0
        %1178 = vmatprep.subr.mxu0 0.0
        %1179 = vmatpush1.xpose.msra.mxu0 0.0
        %1180 = vmatprep.subr.mxu0 0.0
        %1181 = vmatpush1.xpose.msra.mxu0 0.0
        %1182 = vmatprep.mubr.f32.mxu0 0.0
        %1183 = vmatmul.mubr.f32.gmra.mrb[0].mxu0 %v1114
        %v1184 = vpop.f32.mrb[0].mxu0
        %v1185 = vadd.f32 0.0, %v1184
        %v1186 = vpop.f32.mrb[0].mxu0
        %1187 = vdwg.mxu0
        %v1188 = vsel %vm852, %v1185, -inf
        %1189 = vmax.xlane.f32.xlu0 %v1188
        %v1190 = vpop.xlane.xlu0 %1189
        %v1191 = vsub.f32 %v1185, %v1190
        %v1192 = vmul.f32 %v1191, 1.442695
        %v1193 = vpow.pop %v1192
        %v1194 = vsel %vm852, %v1193, 0.0
        %1195 = vadd.xlane.f32.xlu0 %v1194
        %v1196 = vpop.xlane.xlu0 %1195
        %v1197 = vrcp.pop %v1196
        %v1198 = vmul.f32 %v1193, %v1197
        %1199 = vrot.lane.b32.xlu0 %v772, 96
        %v1200 = vpop.permute.xlu0 %1199
        %v1203 = vsel %vm852, %v1198, 0
        %1205 = vmatprep.subr.mxu0 0.0
        %1206 = vmatpush1.msra.mxu0 %v1200
        %1207 = vmatprep.subr.mxu0 0.0
        %1208 = vmatpush1.msra.mxu0 0.0
        %1209 = vmatprep.subr.mxu0 0.0
        %1210 = vmatpush1.msra.mxu0 0.0
        %1211 = vmatprep.subr.mxu0 0.0
        %1212 = vmatpush1.msra.mxu0 0.0
        %1213 = vmatprep.subr.mxu0 0.0
        %1214 = vmatpush1.msra.mxu0 0.0
        %1215 = vmatprep.subr.mxu0 0.0
        %1216 = vmatpush1.msra.mxu0 0.0
        %1217 = vmatprep.subr.mxu0 0.0
        %1218 = vmatpush1.msra.mxu0 0.0
        %1219 = vmatprep.subr.mxu0 0.0
        %1220 = vmatpush1.msra.mxu0 0.0
        %1221 = vmatprep.subr.mxu0 0.0
        %1222 = vmatpush1.msra.mxu0 0.0
        %1223 = vmatprep.subr.mxu0 0.0
        %1224 = vmatpush1.msra.mxu0 0.0
        %1225 = vmatprep.subr.mxu0 0.0
        %1226 = vmatpush1.msra.mxu0 0.0
        %1227 = vmatprep.subr.mxu0 0.0
        %1228 = vmatpush1.msra.mxu0 0.0
        %1229 = vmatprep.subr.mxu0 0.0
        %1230 = vmatpush1.msra.mxu0 0.0
        %1231 = vmatprep.subr.mxu0 0.0
        %1232 = vmatpush1.msra.mxu0 0.0
        %1233 = vmatprep.subr.mxu0 0.0
        %1234 = vmatpush1.msra.mxu0 0.0
        %1235 = vmatprep.subr.mxu0 0.0
        %1236 = vmatpush1.msra.mxu0 0.0
        %1237 = vmatprep.subr.mxu0 0.0
        %1238 = vmatpush1.msra.mxu0 0.0
        %1239 = vmatprep.subr.mxu0 0.0
        %1240 = vmatpush1.msra.mxu0 0.0
        %1241 = vmatprep.subr.mxu0 0.0
        %1242 = vmatpush1.msra.mxu0 0.0
        %1243 = vmatprep.subr.mxu0 0.0
        %1244 = vmatpush1.msra.mxu0 0.0
        %1245 = vmatprep.subr.mxu0 0.0
        %1246 = vmatpush1.msra.mxu0 0.0
        %1247 = vmatprep.subr.mxu0 0.0
        %1248 = vmatpush1.msra.mxu0 0.0
        %1249 = vmatprep.subr.mxu0 0.0
        %1250 = vmatpush1.msra.mxu0 0.0
        %1251 = vmatprep.subr.mxu0 0.0
        %1252 = vmatpush1.msra.mxu0 0.0
        %1253 = vmatprep.subr.mxu0 0.0
        %1254 = vmatpush1.msra.mxu0 0.0
        %1255 = vmatprep.subr.mxu0 0.0
        %1256 = vmatpush1.msra.mxu0 0.0
        %1257 = vmatprep.subr.mxu0 0.0
        %1258 = vmatpush1.msra.mxu0 0.0
        %1259 = vmatprep.subr.mxu0 0.0
        %1260 = vmatpush1.msra.mxu0 0.0
        %1261 = vmatprep.subr.mxu0 0.0
        %1262 = vmatpush1.msra.mxu0 0.0
        %1263 = vmatprep.subr.mxu0 0.0
        %1264 = vmatpush1.msra.mxu0 0.0
        %1265 = vmatprep.subr.mxu0 0.0
        %1266 = vmatpush1.msra.mxu0 0.0
        %1267 = vmatprep.subr.mxu0 0.0
        %1268 = vmatpush1.msra.mxu0 0.0
        %1269 = vmatprep.mubr.f32.mxu0 0.0
        %1270 = vmatmul.mubr.f32.gmra.mrb[0].mxu0 %v1203
        %v1271 = vpop.f32.mrb[0].mxu0
        %v1272 = vadd.f32 0.0, %v1271
        %v1273 = vpop.f32.mrb[0].mxu0
        %1274 = vdwg.mxu0
        %1276 = vrot.lane.b32.xlu0 %v1272, 32
        %v1277 = vpop.permute.xlu0 %1276
        %vm1279 = vcmask 392448
        %1280 = vst.msk [vmem:[#allocation3] sm:$0xff] %vm1279, %v1277
        %1281 = vrot.lane.b32.xlu0 %v770, 80
        %v1282 = vpop.permute.xlu0 %1281
        %1283 = vrot.lane.b32.xlu0 %v770, 16
        %v1284 = vpop.permute.xlu0 %1283
        %v1285 = vsel %vm777, %v1282, 0
        %v1287 = vsel %vm777, %v1284, 0
        %1289 = vmatprep.subr.mxu0 0.0
        %1290 = vmatpush1.xpose.msra.mxu0 %v1287
        %1291 = vmatprep.subr.mxu0 0.0
        %1292 = vmatpush1.xpose.msra.mxu0 0.0
        %1293 = vmatprep.subr.mxu0 0.0
        %1294 = vmatpush1.xpose.msra.mxu0 0.0
        %1295 = vmatprep.subr.mxu0 0.0
        %1296 = vmatpush1.xpose.msra.mxu0 0.0
        %1297 = vmatprep.subr.mxu0 0.0
        %1298 = vmatpush1.xpose.msra.mxu0 0.0
        %1299 = vmatprep.subr.mxu0 0.0
        %1300 = vmatpush1.xpose.msra.mxu0 0.0
        %1301 = vmatprep.subr.mxu0 0.0
        %1302 = vmatpush1.xpose.msra.mxu0 0.0
        %1303 = vmatprep.subr.mxu0 0.0
        %1304 = vmatpush1.xpose.msra.mxu0 0.0
        %1305 = vmatprep.subr.mxu0 0.0
        %1306 = vmatpush1.xpose.msra.mxu0 0.0
        %1307 = vmatprep.subr.mxu0 0.0
        %1308 = vmatpush1.xpose.msra.mxu0 0.0
        %1309 = vmatprep.subr.mxu0 0.0
        %1310 = vmatpush1.xpose.msra.mxu0 0.0
        %1311 = vmatprep.subr.mxu0 0.0
        %1312 = vmatpush1.xpose.msra.mxu0 0.0
        %1313 = vmatprep.subr.mxu0 0.0
        %1314 = vmatpush1.xpose.msra.mxu0 0.0
        %1315 = vmatprep.subr.mxu0 0.0
        %1316 = vmatpush1.xpose.msra.mxu0 0.0
        %1317 = vmatprep.subr.mxu0 0.0
        %1318 = vmatpush1.xpose.msra.mxu0 0.0
        %1319 = vmatprep.subr.mxu0 0.0
        %1320 = vmatpush1.xpose.msra.mxu0 0.0
        %1321 = vmatprep.subr.mxu0 0.0
        %1322 = vmatpush1.xpose.msra.mxu0 0.0
        %1323 = vmatprep.subr.mxu0 0.0
        %1324 = vmatpush1.xpose.msra.mxu0 0.0
        %1325 = vmatprep.subr.mxu0 0.0
        %1326 = vmatpush1.xpose.msra.mxu0 0.0
        %1327 = vmatprep.subr.mxu0 0.0
        %1328 = vmatpush1.xpose.msra.mxu0 0.0
        %1329 = vmatprep.subr.mxu0 0.0
        %1330 = vmatpush1.xpose.msra.mxu0 0.0
        %1331 = vmatprep.subr.mxu0 0.0
        %1332 = vmatpush1.xpose.msra.mxu0 0.0
        %1333 = vmatprep.subr.mxu0 0.0
        %1334 = vmatpush1.xpose.msra.mxu0 0.0
        %1335 = vmatprep.subr.mxu0 0.0
        %1336 = vmatpush1.xpose.msra.mxu0 0.0
        %1337 = vmatprep.subr.mxu0 0.0
        %1338 = vmatpush1.xpose.msra.mxu0 0.0
        %1339 = vmatprep.subr.mxu0 0.0
        %1340 = vmatpush1.xpose.msra.mxu0 0.0
        %1341 = vmatprep.subr.mxu0 0.0
        %1342 = vmatpush1.xpose.msra.mxu0 0.0
        %1343 = vmatprep.subr.mxu0 0.0
        %1344 = vmatpush1.xpose.msra.mxu0 0.0
        %1345 = vmatprep.subr.mxu0 0.0
        %1346 = vmatpush1.xpose.msra.mxu0 0.0
        %1347 = vmatprep.subr.mxu0 0.0
        %1348 = vmatpush1.xpose.msra.mxu0 0.0
        %1349 = vmatprep.subr.mxu0 0.0
        %1350 = vmatpush1.xpose.msra.mxu0 0.0
        %1351 = vmatprep.subr.mxu0 0.0
        %1352 = vmatpush1.xpose.msra.mxu0 0.0
        %1353 = vmatprep.mubr.f32.mxu0 0.0
        %1354 = vmatmul.mubr.f32.gmra.mrb[0].mxu0 %v1285
        %v1355 = vpop.f32.mrb[0].mxu0
        %v1356 = vadd.f32 0.0, %v1355
        %v1357 = vpop.f32.mrb[0].mxu0
        %1358 = vdwg.mxu0
        %v1359 = vsel %vm852, %v1356, -inf
        %1360 = vmax.xlane.f32.xlu0 %v1359
        %v1361 = vpop.xlane.xlu0 %1360
        %v1362 = vsub.f32 %v1356, %v1361
        %v1363 = vmul.f32 %v1362, 1.442695
        %v1364 = vpow.pop %v1363
        %v1365 = vsel %vm852, %v1364, 0.0
        %1366 = vadd.xlane.f32.xlu0 %v1365
        %v1367 = vpop.xlane.xlu0 %1366
        %v1368 = vrcp.pop %v1367
        %v1369 = vmul.f32 %v1364, %v1368
        %1370 = vrot.lane.b32.xlu0 %v772, 80
        %v1371 = vpop.permute.xlu0 %1370
        %v1374 = vsel %vm852, %v1369, 0
        %1376 = vmatprep.subr.mxu0 0.0
        %1377 = vmatpush1.msra.mxu0 %v1371
        %1378 = vmatprep.subr.mxu0 0.0
        %1379 = vmatpush1.msra.mxu0 0.0
        %1380 = vmatprep.subr.mxu0 0.0
        %1381 = vmatpush1.msra.mxu0 0.0
        %1382 = vmatprep.subr.mxu0 0.0
        %1383 = vmatpush1.msra.mxu0 0.0
        %1384 = vmatprep.subr.mxu0 0.0
        %1385 = vmatpush1.msra.mxu0 0.0
        %1386 = vmatprep.subr.mxu0 0.0
        %1387 = vmatpush1.msra.mxu0 0.0
        %1388 = vmatprep.subr.mxu0 0.0
        %1389 = vmatpush1.msra.mxu0 0.0
        %1390 = vmatprep.subr.mxu0 0.0
        %1391 = vmatpush1.msra.mxu0 0.0
        %1392 = vmatprep.subr.mxu0 0.0
        %1393 = vmatpush1.msra.mxu0 0.0
        %1394 = vmatprep.subr.mxu0 0.0
        %1395 = vmatpush1.msra.mxu0 0.0
        %1396 = vmatprep.subr.mxu0 0.0
        %1397 = vmatpush1.msra.mxu0 0.0
        %1398 = vmatprep.subr.mxu0 0.0
        %1399 = vmatpush1.msra.mxu0 0.0
        %1400 = vmatprep.subr.mxu0 0.0
        %1401 = vmatpush1.msra.mxu0 0.0
        %1402 = vmatprep.subr.mxu0 0.0
        %1403 = vmatpush1.msra.mxu0 0.0
        %1404 = vmatprep.subr.mxu0 0.0
        %1405 = vmatpush1.msra.mxu0 0.0
        %1406 = vmatprep.subr.mxu0 0.0
        %1407 = vmatpush1.msra.mxu0 0.0
        %1408 = vmatprep.subr.mxu0 0.0
        %1409 = vmatpush1.msra.mxu0 0.0
        %1410 = vmatprep.subr.mxu0 0.0
        %1411 = vmatpush1.msra.mxu0 0.0
        %1412 = vmatprep.subr.mxu0 0.0
        %1413 = vmatpush1.msra.mxu0 0.0
        %1414 = vmatprep.subr.mxu0 0.0
        %1415 = vmatpush1.msra.mxu0 0.0
        %1416 = vmatprep.subr.mxu0 0.0
        %1417 = vmatpush1.msra.mxu0 0.0
        %1418 = vmatprep.subr.mxu0 0.0
        %1419 = vmatpush1.msra.mxu0 0.0
        %1420 = vmatprep.subr.mxu0 0.0
        %1421 = vmatpush1.msra.mxu0 0.0
        %1422 = vmatprep.subr.mxu0 0.0
        %1423 = vmatpush1.msra.mxu0 0.0
        %1424 = vmatprep.subr.mxu0 0.0
        %1425 = vmatpush1.msra.mxu0 0.0
        %1426 = vmatprep.subr.mxu0 0.0
        %1427 = vmatpush1.msra.mxu0 0.0
        %1428 = vmatprep.subr.mxu0 0.0
        %1429 = vmatpush1.msra.mxu0 0.0
        %1430 = vmatprep.subr.mxu0 0.0
        %1431 = vmatpush1.msra.mxu0 0.0
        %1432 = vmatprep.subr.mxu0 0.0
        %1433 = vmatpush1.msra.mxu0 0.0
        %1434 = vmatprep.subr.mxu0 0.0
        %1435 = vmatpush1.msra.mxu0 0.0
        %1436 = vmatprep.subr.mxu0 0.0
        %1437 = vmatpush1.msra.mxu0 0.0
        %1438 = vmatprep.subr.mxu0 0.0
        %1439 = vmatpush1.msra.mxu0 0.0
        %1440 = vmatprep.mubr.f32.mxu0 0.0
        %1441 = vmatmul.mubr.f32.gmra.mrb[0].mxu0 %v1374
        %v1442 = vpop.f32.mrb[0].mxu0
        %v1443 = vadd.f32 0.0, %v1442
        %v1444 = vpop.f32.mrb[0].mxu0
        %1445 = vdwg.mxu0
        %1447 = vrot.lane.b32.xlu0 %v1443, 48
        %v1448 = vpop.permute.xlu0 %1447
        %vm1450 = vcmask 523648
        %1451 = vst.msk [vmem:[#allocation3] sm:$0xff] %vm1450, %v1448
        %v1452 = vld [vmem:[#allocation3] sm:$0xff]
        %v1453 = vld [vmem:[%s627] sm:$0xff]
        %v1454 = vld [vmem:[%s627 + $0x8] sm:$0xff]
        %v1455 = vld [vmem:[%s627 + $0x10] sm:$0xff]
        %v1456 = vld [vmem:[%s627 + $0x18] sm:$0xff]
        %v1457 = vld [vmem:[%s627 + $0x20] sm:$0xff]
        %v1458 = vld [vmem:[%s627 + $0x28] sm:$0xff]
        %v1459 = vld [vmem:[%s627 + $0x30] sm:$0xff]
        %v1460 = vld [vmem:[%s627 + $0x38] sm:$0xff]
        %v1461 = vld [vmem:[%s630] sm:$0x1]
        %v1463 = vlaneseq
        %v1464 = vshrl.u32 %v1463, 7
        %v1465 = vsub.s32 0, %v1464
        %v1466 = vrot.slane %v1461, %v1465
        %vm1468 = vcmask 523264
        %v1470 = vsel %vm1468, %v1452, 0
        %1472 = vmatprep.subr.mxu0 0.0
        %1473 = vmatpush1.msra.mxu0 %v1453
        %1474 = vmatprep.subr.mxu0 0.0
        %1475 = vmatpush1.msra.mxu0 %v1454
        %1476 = vmatprep.subr.mxu0 0.0
        %1477 = vmatpush1.msra.mxu0 %v1455
        %1478 = vmatprep.subr.mxu0 0.0
        %1479 = vmatpush1.msra.mxu0 %v1456
        %1480 = vmatprep.subr.mxu0 0.0
        %1481 = vmatpush1.msra.mxu0 %v1457
        %1482 = vmatprep.subr.mxu0 0.0
        %1483 = vmatpush1.msra.mxu0 %v1458
        %1484 = vmatprep.subr.mxu0 0.0
        %1485 = vmatpush1.msra.mxu0 %v1459
        %1486 = vmatprep.subr.mxu0 0.0
        %1487 = vmatpush1.msra.mxu0 %v1460
        %1488 = vmatprep.subr.mxu0 0.0
        %1489 = vmatpush1.msra.mxu0 0.0
        %1490 = vmatprep.subr.mxu0 0.0
        %1491 = vmatpush1.msra.mxu0 0.0
        %1492 = vmatprep.subr.mxu0 0.0
        %1493 = vmatpush1.msra.mxu0 0.0
        %1494 = vmatprep.subr.mxu0 0.0
        %1495 = vmatpush1.msra.mxu0 0.0
        %1496 = vmatprep.subr.mxu0 0.0
        %1497 = vmatpush1.msra.mxu0 0.0
        %1498 = vmatprep.subr.mxu0 0.0
        %1499 = vmatpush1.msra.mxu0 0.0
        %1500 = vmatprep.subr.mxu0 0.0
        %1501 = vmatpush1.msra.mxu0 0.0
        %1502 = vmatprep.subr.mxu0 0.0
        %1503 = vmatpush1.msra.mxu0 0.0
        %1504 = vmatprep.subr.mxu0 0.0
        %1505 = vmatpush1.msra.mxu0 0.0
        %1506 = vmatprep.subr.mxu0 0.0
        %1507 = vmatpush1.msra.mxu0 0.0
        %1508 = vmatprep.subr.mxu0 0.0
        %1509 = vmatpush1.msra.mxu0 0.0
        %1510 = vmatprep.subr.mxu0 0.0
        %1511 = vmatpush1.msra.mxu0 0.0
        %1512 = vmatprep.subr.mxu0 0.0
        %1513 = vmatpush1.msra.mxu0 0.0
        %1514 = vmatprep.subr.mxu0 0.0
        %1515 = vmatpush1.msra.mxu0 0.0
        %1516 = vmatprep.subr.mxu0 0.0
        %1517 = vmatpush1.msra.mxu0 0.0
        %1518 = vmatprep.subr.mxu0 0.0
        %1519 = vmatpush1.msra.mxu0 0.0
        %1520 = vmatprep.subr.mxu0 0.0
        %1521 = vmatpush1.msra.mxu0 0.0
        %1522 = vmatprep.subr.mxu0 0.0
        %1523 = vmatpush1.msra.mxu0 0.0
        %1524 = vmatprep.subr.mxu0 0.0
        %1525 = vmatpush1.msra.mxu0 0.0
        %1526 = vmatprep.subr.mxu0 0.0
        %1527 = vmatpush1.msra.mxu0 0.0
        %1528 = vmatprep.subr.mxu0 0.0
        %1529 = vmatpush1.msra.mxu0 0.0
        %1530 = vmatprep.subr.mxu0 0.0
        %1531 = vmatpush1.msra.mxu0 0.0
        %1532 = vmatprep.subr.mxu0 0.0
        %1533 = vmatpush1.msra.mxu0 0.0
        %1534 = vmatprep.subr.mxu0 0.0
        %1535 = vmatpush1.msra.mxu0 0.0
        %1536 = vmatprep.mubr.f32.mxu0 0.0
        %1537 = vmatmul.mubr.f32.gmra.mrb[0].mxu0 %v1470
        %v1538 = vpop.f32.mrb[0].mxu0
        %v1539 = vadd.f32 %v1466, %v1538
        %v1540 = vpop.f32.mrb[0].mxu0
        %1541 = vdwg.mxu0
        %v1542 = vadd.f32 %v1539, %v660
        %v1543 = vld [vmem:[%s633] sm:$0x1]
        %v1544 = vld [vmem:[%s636] sm:$0x1]
        %v1545 = vsel %vm663, %v1542, 0.0
        %1546 = vadd.xlane.f32.xlu0 %v1545
        %v1547 = vpop.xlane.xlu0 %1546
        %v1548 = vmul.f32 %v1547, %v667
        %v1549 = vsub.f32 %v1542, %v1548
        %v1550 = vmul.f32 %v1549, %v1549
        %v1551 = vsel %vm663, %v1550, 0.0
        %1552 = vadd.xlane.f32.xlu0 %v1551
        %v1553 = vpop.xlane.xlu0 %1552
        %v1554 = vmul.f32 %v1553, %v667
        %v1555 = vadd.f32 %v1554, 1e-05
        %v1556 = vrsqrt.pop %v1555
        %v1557 = vmul.f32 %v1549, %v1556
        %v1559 = vlaneseq
        %v1560 = vshrl.u32 %v1559, 7
        %v1561 = vsub.s32 0, %v1560
        %v1562 = vrot.slane %v1543, %v1561
        %v1564 = vmul.f32 %v1557, %v1562
        %v1566 = vlaneseq
        %v1567 = vshrl.u32 %v1566, 7
        %v1568 = vsub.s32 0, %v1567
        %v1569 = vrot.slane %v1544, %v1568
        %v1571 = vadd.f32 %v1564, %v1569
        %v1572 = vld [vmem:[%s641] sm:$0xff]
        %v1573 = vld [vmem:[%s641 + $0x8] sm:$0xff]
        %v1574 = vld [vmem:[%s641 + $0x10] sm:$0xff]
        %v1575 = vld [vmem:[%s641 + $0x18] sm:$0xff]
        %v1576 = vld [vmem:[%s644] sm:$0x1]
        %v1578 = vlaneseq
        %v1579 = vshrl.u32 %v1578, 7
        %v1580 = vsub.s32 0, %v1579
        %v1581 = vrot.slane %v1576, %v1580
        %v1584 = vsel %vm663, %v1571, 0
        %1586 = vmatprep.subr.mxu0 0.0
        %1587 = vmatpush1.msra.mxu0 %v1572
        %1588 = vmatprep.subr.mxu0 0.0
        %1589 = vmatpush1.msra.mxu0 %v1573
        %1590 = vmatprep.subr.mxu0 0.0
        %1591 = vmatpush1.msra.mxu0 %v1574
        %1592 = vmatprep.subr.mxu0 0.0
        %1593 = vmatpush1.msra.mxu0 %v1575
        %1594 = vmatprep.subr.mxu0 0.0
        %1595 = vmatpush1.msra.mxu0 0.0
        %1596 = vmatprep.subr.mxu0 0.0
        %1597 = vmatpush1.msra.mxu0 0.0
        %1598 = vmatprep.subr.mxu0 0.0
        %1599 = vmatpush1.msra.mxu0 0.0
        %1600 = vmatprep.subr.mxu0 0.0
        %1601 = vmatpush1.msra.mxu0 0.0
        %1602 = vmatprep.subr.mxu0 0.0
        %1603 = vmatpush1.msra.mxu0 0.0
        %1604 = vmatprep.subr.mxu0 0.0
        %1605 = vmatpush1.msra.mxu0 0.0
        %1606 = vmatprep.subr.mxu0 0.0
        %1607 = vmatpush1.msra.mxu0 0.0
        %1608 = vmatprep.subr.mxu0 0.0
        %1609 = vmatpush1.msra.mxu0 0.0
        %1610 = vmatprep.subr.mxu0 0.0
        %1611 = vmatpush1.msra.mxu0 0.0
        %1612 = vmatprep.subr.mxu0 0.0
        %1613 = vmatpush1.msra.mxu0 0.0
        %1614 = vmatprep.subr.mxu0 0.0
        %1615 = vmatpush1.msra.mxu0 0.0
        %1616 = vmatprep.subr.mxu0 0.0
        %1617 = vmatpush1.msra.mxu0 0.0
        %1618 = vmatprep.subr.mxu0 0.0
        %1619 = vmatpush1.msra.mxu0 0.0
        %1620 = vmatprep.subr.mxu0 0.0
        %1621 = vmatpush1.msra.mxu0 0.0
        %1622 = vmatprep.subr.mxu0 0.0
        %1623 = vmatpush1.msra.mxu0 0.0
        %1624 = vmatprep.subr.mxu0 0.0
        %1625 = vmatpush1.msra.mxu0 0.0
        %1626 = vmatprep.subr.mxu0 0.0
        %1627 = vmatpush1.msra.mxu0 0.0
        %1628 = vmatprep.subr.mxu0 0.0
        %1629 = vmatpush1.msra.mxu0 0.0
        %1630 = vmatprep.subr.mxu0 0.0
        %1631 = vmatpush1.msra.mxu0 0.0
        %1632 = vmatprep.subr.mxu0 0.0
        %1633 = vmatpush1.msra.mxu0 0.0
        %1634 = vmatprep.subr.mxu0 0.0
        %1635 = vmatpush1.msra.mxu0 0.0
        %1636 = vmatprep.subr.mxu0 0.0
        %1637 = vmatpush1.msra.mxu0 0.0
        %1638 = vmatprep.subr.mxu0 0.0
        %1639 = vmatpush1.msra.mxu0 0.0
        %1640 = vmatprep.subr.mxu0 0.0
        %1641 = vmatpush1.msra.mxu0 0.0
        %1642 = vmatprep.subr.mxu0 0.0
        %1643 = vmatpush1.msra.mxu0 0.0
        %1644 = vmatprep.subr.mxu0 0.0
        %1645 = vmatpush1.msra.mxu0 0.0
        %1646 = vmatprep.subr.mxu0 0.0
        %1647 = vmatpush1.msra.mxu0 0.0
        %1648 = vmatprep.subr.mxu0 0.0
        %1649 = vmatpush1.msra.mxu0 0.0
        %1650 = vmatprep.mubr.f32.mxu0 0.0
        %1651 = vmatmul.mubr.f32.gmra.mrb[0].mxu0 %v1584
        %v1652 = vpop.f32.mrb[0].mxu0
        %v1653 = vadd.f32 %v1581, %v1652
        %v1654 = vpop.f32.mrb[0].mxu0
        %1655 = vdwg.mxu0
        %v1656 = vmul.f32 %v1653, 0.5
        %v1657 = vmul.f32 %v1653, 0.70710677
        %v1658 = verf.f32.pop %v1657
        %v1659 = vadd.f32 %v1658, 1.0
        %v1660 = vmul.f32 %v1656, %v1659
        %v1661 = vld [vmem:[%s649] sm:$0xff]
        %v1662 = vld [vmem:[%s649 + $0x8] sm:$0xff]
        %v1663 = vld [vmem:[%s649 + $0x10] sm:$0xff]
        %v1664 = vld [vmem:[%s649 + $0x18] sm:$0xff]
        %v1665 = vld [vmem:[%s649 + $0x20] sm:$0xff]
        %v1666 = vld [vmem:[%s649 + $0x28] sm:$0xff]
        %v1667 = vld [vmem:[%s649 + $0x30] sm:$0xff]
        %v1668 = vld [vmem:[%s649 + $0x38] sm:$0xff]
        %v1669 = vld [vmem:[%s652] sm:$0x1]
        %v1671 = vlaneseq
        %v1672 = vshrl.u32 %v1671, 7
        %v1673 = vsub.s32 0, %v1672
        %v1674 = vrot.slane %v1669, %v1673
        %v1677 = vsel %vm1468, %v1660, 0
        %1679 = vmatprep.subr.mxu0 0.0
        %1680 = vmatpush1.msra.mxu0 %v1661
        %1681 = vmatprep.subr.mxu0 0.0
        %1682 = vmatpush1.msra.mxu0 %v1662
        %1683 = vmatprep.subr.mxu0 0.0
        %1684 = vmatpush1.msra.mxu0 %v1663
        %1685 = vmatprep.subr.mxu0 0.0
        %1686 = vmatpush1.msra.mxu0 %v1664
        %1687 = vmatprep.subr.mxu0 0.0
        %1688 = vmatpush1.msra.mxu0 %v1665
        %1689 = vmatprep.subr.mxu0 0.0
        %1690 = vmatpush1.msra.mxu0 %v1666
        %1691 = vmatprep.subr.mxu0 0.0
        %1692 = vmatpush1.msra.mxu0 %v1667
        %1693 = vmatprep.subr.mxu0 0.0
        %1694 = vmatpush1.msra.mxu0 %v1668
        %1695 = vmatprep.subr.mxu0 0.0
        %1696 = vmatpush1.msra.mxu0 0.0
        %1697 = vmatprep.subr.mxu0 0.0
        %1698 = vmatpush1.msra.mxu0 0.0
        %1699 = vmatprep.subr.mxu0 0.0
        %1700 = vmatpush1.msra.mxu0 0.0
        %1701 = vmatprep.subr.mxu0 0.0
        %1702 = vmatpush1.msra.mxu0 0.0
        %1703 = vmatprep.subr.mxu0 0.0
        %1704 = vmatpush1.msra.mxu0 0.0
        %1705 = vmatprep.subr.mxu0 0.0
        %1706 = vmatpush1.msra.mxu0 0.0
        %1707 = vmatprep.subr.mxu0 0.0
        %1708 = vmatpush1.msra.mxu0 0.0
        %1709 = vmatprep.subr.mxu0 0.0
        %1710 = vmatpush1.msra.mxu0 0.0
        %1711 = vmatprep.subr.mxu0 0.0
        %1712 = vmatpush1.msra.mxu0 0.0
        %1713 = vmatprep.subr.mxu0 0.0
        %1714 = vmatpush1.msra.mxu0 0.0
        %1715 = vmatprep.subr.mxu0 0.0
        %1716 = vmatpush1.msra.mxu0 0.0
        %1717 = vmatprep.subr.mxu0 0.0
        %1718 = vmatpush1.msra.mxu0 0.0
        %1719 = vmatprep.subr.mxu0 0.0
        %1720 = vmatpush1.msra.mxu0 0.0
        %1721 = vmatprep.subr.mxu0 0.0
        %1722 = vmatpush1.msra.mxu0 0.0
        %1723 = vmatprep.subr.mxu0 0.0
        %1724 = vmatpush1.msra.mxu0 0.0
        %1725 = vmatprep.subr.mxu0 0.0
        %1726 = vmatpush1.msra.mxu0 0.0
        %1727 = vmatprep.subr.mxu0 0.0
        %1728 = vmatpush1.msra.mxu0 0.0
        %1729 = vmatprep.subr.mxu0 0.0
        %1730 = vmatpush1.msra.mxu0 0.0
        %1731 = vmatprep.subr.mxu0 0.0
        %1732 = vmatpush1.msra.mxu0 0.0
        %1733 = vmatprep.subr.mxu0 0.0
        %1734 = vmatpush1.msra.mxu0 0.0
        %1735 = vmatprep.subr.mxu0 0.0
        %1736 = vmatpush1.msra.mxu0 0.0
        %1737 = vmatprep.subr.mxu0 0.0
        %1738 = vmatpush1.msra.mxu0 0.0
        %1739 = vmatprep.subr.mxu0 0.0
        %1740 = vmatpush1.msra.mxu0 0.0
        %1741 = vmatprep.subr.mxu0 0.0
        %1742 = vmatpush1.msra.mxu0 0.0
        %1743 = vmatprep.mubr.f32.mxu0 0.0
        %1744 = vmatmul.mubr.f32.gmra.mrb[0].mxu0 %v1677
        %v1745 = vpop.f32.mrb[0].mxu0
        %v1746 = vadd.f32 %v1674, %v1745
        %v1747 = vpop.f32.mrb[0].mxu0
        %1748 = vdwg.mxu0
        %v1749 = vadd.f32 %v1746, %v1542
        %1750 = vst.msk [vmem:[#allocation2] sm:$0xff] %vm663, %v1749
        %p1751 = scmp.eq.s32.totalorder %s33, 1
        // Predicated region
        $region81: #{tpu_custom_call.1} parent=75 // pred_check
          %p1752 = pneg %p1751
        $region82: #{tpu_custom_call.1} parent=75 // pred_check_branch
          %1754 = sbr.rel (%p1752) target = $region84
        $region83: #{tpu_custom_call.1} parent=75 // pred_region
          %v1755 = vld [vmem:[%s12] sm:$0x1]
          %v1756 = vld [vmem:[%s13] sm:$0x1]
          %v1757 = vsel %vm663, %v1749, 0.0
          %1758 = vadd.xlane.f32.xlu0 %v1757
          %v1759 = vpop.xlane.xlu0 %1758
          %v1760 = vmul.f32 %v1759, %v667
          %v1761 = vsub.f32 %v1749, %v1760
          %v1762 = vmul.f32 %v1761, %v1761
          %v1763 = vsel %vm663, %v1762, 0.0
          %1764 = vadd.xlane.f32.xlu0 %v1763
          %v1765 = vpop.xlane.xlu0 %1764
          %v1766 = vmul.f32 %v1765, %v667
          %v1767 = vadd.f32 %v1766, 1e-05
          %v1768 = vrsqrt.pop %v1767
          %v1769 = vmul.f32 %v1761, %v1768
          %v1771 = vlaneseq
          %v1772 = vshrl.u32 %v1771, 7
          %v1773 = vsub.s32 0, %v1772
          %v1774 = vrot.slane %v1755, %v1773
          %v1776 = vmul.f32 %v1769, %v1774
          %v1778 = vlaneseq
          %v1779 = vshrl.u32 %v1778, 7
          %v1780 = vsub.s32 0, %v1779
          %v1781 = vrot.slane %v1756, %v1780
          %v1783 = vadd.f32 %v1776, %v1781
          %1784 = vst.msk [vmem:[%s607] sm:$0xff] %vm663, %v1783
        $region84: #{tpu_custom_call.1} parent=75 // pred_fallthru
          _
        %s1785 = sand.u32 %s402, 1
        %s1786 = scalar_lea.sflag [#allocation5], %s1785
        %s1787 = sand.u32 %s402, 1
        %s1788 = smul.addr %s1787, 8
        %s1789 = scalar_lea.vmem [#allocation4], %s1788
        // Predicated region
        $region85: #{tpu_custom_call.1} parent=75 // pred_check
          %p1790 = pneg %p412
        $region86: #{tpu_custom_call.1} parent=75 // pred_check_branch
          %1792 = sbr.rel (%p1790) target = $region88
        $region87: #{tpu_custom_call.1} parent=75 // pred_region
          %s1794 = ssub.s32 128, 128
          %1795 = vsyncadd %s1786, %s1794
          %s1796 = smul.addr %s32, 128
          %s1797 = scalar_lea.hbm %s14, %s1796
          %s1799 = sshll.u32 %s1789, 4
          %s1800 = int_to_ptr.vmem [resolvable:$true] %s1799
          %1802 = dma.vmem_to_hbm [thread:$0]  %s1800, 128, %s1797, %s1786
        $region88: #{tpu_custom_call.1} parent=75 // pred_fallthru
          _
      $region76: #{tpu_custom_call.1} parent=5 // pred_fallthru
        _
      %p1803 = scmp.le.s32.totalorder 2, %s23
      // Predicated region
      $region89: #{tpu_custom_call.1} parent=5 // pred_check
        %p1804 = pneg %p1803
      $region90: #{tpu_custom_call.1} parent=5 // pred_check_branch
        %1806 = sbr.rel (%p1804) target = $region92
      $region91: #{tpu_custom_call.1} parent=5 // pred_region
        %s1807 = ssub.s32 %s23, 2
        // Predicated region
        $region93: #{tpu_custom_call.1} parent=91 // pred_check
          %p1808 = pneg %p418
        $region94: #{tpu_custom_call.1} parent=91 // pred_check_branch
          %1810 = sbr.rel (%p1808) target = $region96
        $region95: #{tpu_custom_call.1} parent=91 // pred_region
          %s1811 = sand.u32 %s403, 1
          %s1812 = scalar_lea.sflag [#allocation5], %s1811
          %s1813 = sand.u32 %s403, 1
          %s1814 = smul.addr %s1813, 8
          %s1815 = scalar_lea.vmem [#allocation4], %s1814
          %1816 = dma.done %s1812, 128
        $region96: #{tpu_custom_call.1} parent=91 // pred_fallthru
          _
      $region92: #{tpu_custom_call.1} parent=5 // pred_fallthru
        _
    $region6: #{tpu_custom_call.1} parent=1 // loop_footer
      %s27 = sadd.s32 1, %s23
    $region7: #{tpu_custom_call.1} parent=1 // loop_footer_branch
      %22 = sbr.rel target = $region3
    $region8: #{tpu_custom_call.1} parent=1 // loop_exit
      _
    %1817 = vsyncpa [#allocation5], 1
    %s1818 = scalar_lea.sflag [#allocation5], 1
    %1819 = vsyncpa %s1818, 1

</llo_original>
